<compile_context>
chip_gen: v7x
topology: tpu7x:2x2x1
jax: 0.10.0
libtpu: 0.0.40
codegen_flags: <defaults>
</compile_context>

<pallas_src>
import jax
import jax.numpy as jnp
from jax import lax
from jax.experimental import pallas as pl
from jax.experimental.pallas import tpu as pltpu


def _round_up(x: int, m: int) -> int:
    return ((x + m - 1) // m) * m


# ----------------------------------------------------------------------------
# Kernels
# ----------------------------------------------------------------------------
def _cconv_kernel_single_k(xr_ref, xi_ref, wr_ref, wi_ref, br_ref, bi_ref,
                           yr_ref, yi_ref):
    """One M tile, whole K resident in VMEM: 4 MXU dots + epilogue bias add."""
    xr = xr_ref[...]
    xi = xi_ref[...]
    wr = wr_ref[...]
    wi = wi_ref[...]
    rr = jnp.dot(xr, wr, preferred_element_type=jnp.float32)
    ii = jnp.dot(xi, wi, preferred_element_type=jnp.float32)
    ri = jnp.dot(xr, wi, preferred_element_type=jnp.float32)
    ir = jnp.dot(xi, wr, preferred_element_type=jnp.float32)
    yr_ref[...] = (rr - ii) + br_ref[...]
    yi_ref[...] = (ri + ir) + bi_ref[...]


def _cconv_kernel_k_tiled(xr_ref, xi_ref, wr_ref, wi_ref, br_ref, bi_ref,
                          yr_ref, yi_ref, accr_ref, acci_ref):
    """K-tiled variant with f32 VMEM accumulators; K is the trailing grid axis."""
    k = pl.program_id(1)

    @pl.when(k == 0)
    def _():
        accr_ref[...] = jnp.zeros_like(accr_ref)
        acci_ref[...] = jnp.zeros_like(acci_ref)

    xr = xr_ref[...]
    xi = xi_ref[...]
    wr = wr_ref[...]
    wi = wi_ref[...]
    accr_ref[...] += (jnp.dot(xr, wr, preferred_element_type=jnp.float32)
                      - jnp.dot(xi, wi, preferred_element_type=jnp.float32))
    acci_ref[...] += (jnp.dot(xr, wi, preferred_element_type=jnp.float32)
                      + jnp.dot(xi, wr, preferred_element_type=jnp.float32))

    @pl.when(k == pl.num_programs(1) - 1)
    def _():
        yr_ref[...] = accr_ref[...] + br_ref[...]
        yi_ref[...] = acci_ref[...] + bi_ref[...]


# ----------------------------------------------------------------------------
# Pallas GEMM wrapper:  [Yr | Yi] = f(Xr, Xi, Wr, Wi) + bias
# ----------------------------------------------------------------------------
def _complex_gemm(cols_r, cols_i, wr_t, wi_t, bias_r, bias_i, *,
                  tm: int = 512, max_single_k: int = 2048, k_tile: int = 512,
                  vmem_limit_bytes: int = 48 * 1024 * 1024):
    """cols_* : (M, K) im2col planes (compute dtype, e.g. bf16)
       w*_t   : (K, Cout) transposed flattened weights (compute dtype)
       bias_* : (Cout,) f32 bias rows already folded to (br-bi) / (br+bi)
       returns yr, yi : (M, Cout) float32
    """
    M, K = cols_r.shape
    K2, Cout = wr_t.shape
    assert K == K2 and cols_i.shape == cols_r.shape and wi_t.shape == wr_t.shape

    # --- padded / tiled sizes ------------------------------------------------
    Coutp = _round_up(Cout, 128)            # lane-dense outputs & weight N dim
    Kp = _round_up(K, 128)
    if Kp <= max_single_k:
        tk, nk = Kp, 1                       # whole K in one tile: no reduction axis
    else:
        tk = k_tile
        Kp = _round_up(K, tk)
        nk = Kp // tk

    M16 = _round_up(M, 16)                   # bf16 sublane-friendly
    if M16 <= tm:
        tm_eff, Mp = M16, M16
    else:
        tm_eff = tm
        Mp = _round_up(M, tm)
    nm = Mp // tm_eff

    # --- single pad per operand, already in the compute dtype ----------------
    cr = jnp.pad(cols_r, ((0, Mp - M), (0, Kp - K)))
    ci = jnp.pad(cols_i, ((0, Mp - M), (0, Kp - K)))
    wrp = jnp.pad(wr_t, ((0, Kp - K), (0, Coutp - Cout)))
    wip = jnp.pad(wi_t, ((0, Kp - K), (0, Coutp - Cout)))
    brp = jnp.pad(bias_r.astype(jnp.float32).reshape(1, Cout),
                  ((0, 0), (0, Coutp - Cout)))
    bip = jnp.pad(bias_i.astype(jnp.float32).reshape(1, Cout),
                  ((0, 0), (0, Coutp - Cout)))

    out_shapes = (jax.ShapeDtypeStruct((Mp, Coutp), jnp.float32),
                  jax.ShapeDtypeStruct((Mp, Coutp), jnp.float32))

    if nk == 1:
        kernel = _cconv_kernel_single_k
        grid = (nm,)
        in_specs = [
            pl.BlockSpec((tm_eff, Kp), lambda i: (i, 0)),      # Xr plane (streams)
            pl.BlockSpec((tm_eff, Kp), lambda i: (i, 0)),      # Xi plane (streams)
            pl.BlockSpec((Kp, Coutp), lambda i: (0, 0)),       # Wr (stationary)
            pl.BlockSpec((Kp, Coutp), lambda i: (0, 0)),       # Wi (stationary)
            pl.BlockSpec((1, Coutp), lambda i: (0, 0)),        # bias (real part)
            pl.BlockSpec((1, Coutp), lambda i: (0, 0)),        # bias (imag part)
        ]
        out_specs = [
            pl.BlockSpec((tm_eff, Coutp), lambda i: (i, 0)),
            pl.BlockSpec((tm_eff, Coutp), lambda i: (i, 0)),
        ]
        scratch_shapes = []
        dim_sem = ("parallel",)
    else:
        kernel = _cconv_kernel_k_tiled
        grid = (nm, nk)                                        # K is trailing
        in_specs = [
            pl.BlockSpec((tm_eff, tk), lambda i, k: (i, k)),
            pl.BlockSpec((tm_eff, tk), lambda i, k: (i, k)),
            pl.BlockSpec((tk, Coutp), lambda i, k: (k, 0)),
            pl.BlockSpec((tk, Coutp), lambda i, k: (k, 0)),
            pl.BlockSpec((1, Coutp), lambda i, k: (0, 0)),
            pl.BlockSpec((1, Coutp), lambda i, k: (0, 0)),
        ]
        out_specs = [
            pl.BlockSpec((tm_eff, Coutp), lambda i, k: (i, 0)),
            pl.BlockSpec((tm_eff, Coutp), lambda i, k: (i, 0)),
        ]
        scratch_shapes = [pltpu.VMEM((tm_eff, Coutp), jnp.float32),
                          pltpu.VMEM((tm_eff, Coutp), jnp.float32)]
        dim_sem = ("parallel", "arbitrary")

    yr, yi = pl.pallas_call(
        kernel,
        out_shape=out_shapes,
        grid_spec=pltpu.PrefetchScalarGridSpec(
            num_scalar_prefetch=0,
            grid=grid,
            in_specs=in_specs,
            out_specs=out_specs,
            scratch_shapes=scratch_shapes,
        ),
        compiler_params=pltpu.CompilerParams(
            dimension_semantics=dim_sem,
            vmem_limit_bytes=vmem_limit_bytes,
        ),
    )(cr, ci, wrp, wip, brp, bip)

    return yr[:M, :Cout], yi[:M, :Cout]


# ----------------------------------------------------------------------------
# im2col (patch feature order = (C, kh, kw), matching PyTorch OIHW weight flatten)
# ----------------------------------------------------------------------------
def _im2col(x, kh, kw, stride, padding, dilation):
    N, C, H, W = x.shape
    if padding > 0:
        x = jnp.pad(x, ((0, 0), (0, 0), (padding, padding), (padding, padding)))
    Hp, Wp = H + 2 * padding, W + 2 * padding
    Ho = (Hp - dilation * (kh - 1) - 1) // stride + 1
    Wo = (Wp - dilation * (kw - 1) - 1) // stride + 1

    patches = []
    for i in range(kh):
        for j in range(kw):
            r0, c0 = i * dilation, j * dilation
            p = lax.slice(
                x,
                (0, 0, r0, c0),
                (N, C, r0 + (Ho - 1) * stride + 1, c0 + (Wo - 1) * stride + 1),
                (1, 1, stride, stride),
            )
            patches.append(p)  # (N, C, Ho, Wo)

    # (kh*kw, N, C, Ho, Wo) -> (N, Ho, Wo, C, kh*kw) -> (N*Ho*Wo, C*kh*kw)
    col = jnp.stack(patches, axis=0)
    col = col.transpose(1, 3, 4, 2, 0).reshape(N * Ho * Wo, C * kh * kw)
    return col, Ho, Wo


# ----------------------------------------------------------------------------
# complexConv2d forward
# ----------------------------------------------------------------------------
def complex_conv2d(x, wr, br, wi, bi, *, stride=1, padding=0, dilation=1,
                   groups=1, compute_dtype=jnp.bfloat16, tm=512):
    """Pallas implementation of complexConv2d.forward (NCHW complex input)."""
    assert jnp.issubdtype(x.dtype, jnp.complexfloating), "expects complex input"
    assert groups == 1  # TODO(synk): grouped complex conv (groups>1) not implemented
    # TODO(synk): only padding_mode='zeros' is supported (PyTorch default)

    N, Cin, H, W = x.shape
    Cout, Cin_w, kh, kw = wr.shape
    assert Cin_w == Cin and wi.shape == wr.shape

    # Cast once to the MXU compute dtype so im2col / padding only touch that width.
    xr = jnp.real(x).astype(compute_dtype)
    xi = jnp.imag(x).astype(compute_dtype)

    cols_r, Ho, Wo = _im2col(xr, kh, kw, stride, padding, dilation)
    cols_i, _, _ = _im2col(xi, kh, kw, stride, padding, dilation)
    K = Cin * kh * kw

    wr_t = wr.reshape(Cout, K).T.astype(compute_dtype)   # (K, Cout)
    wi_t = wi.reshape(Cout, K).T.astype(compute_dtype)   # (K, Cout)
    bias_r = (br - bi).astype(jnp.float32)               # bias of the real plane
    bias_i = (br + bi).astype(jnp.float32)               # bias of the imag plane

    yr, yi = _complex_gemm(cols_r, cols_i, wr_t, wi_t, bias_r, bias_i, tm=tm)

    yr = yr.reshape(N, Ho, Wo, Cout).transpose(0, 3, 1, 2)
    yi = yi.reshape(N, Ho, Wo, Cout).transpose(0, 3, 1, 2)
    return lax.complex(yr, yi).astype(jnp.complex64)


if __name__ == "__main__":
    key = jax.random.PRNGKey(0)
    k_xr, k_xi, k_wr, k_wi, k_br, k_bi = jax.random.split(key, 6)

    # Small NCHW example consistent with the module: batch=2, in_ch=4, 16x16,
    # out_ch=8, kernel=3, stride=1, padding=0 (PyTorch Conv2d defaults).
    N, Cin, H, W = 2, 4, 16, 16
    Cout, ksz = 8, 3

    x = (jax.random.normal(k_xr, (N, Cin, H, W), dtype=jnp.float32)
         + 1j * jax.random.normal(k_xi, (N, Cin, H, W), dtype=jnp.float32)
         ).astype(jnp.complex64)

    fan_in = Cin * ksz * ksz
    bound = 1.0 / (fan_in ** 0.5)
    wr = jax.random.uniform(k_wr, (Cout, Cin, ksz, ksz), jnp.float32, -bound, bound)
    wi = jax.random.uniform(k_wi, (Cout, Cin, ksz, ksz), jnp.float32, -bound, bound)
    br = jax.random.uniform(k_br, (Cout,), jnp.float32, -bound, bound)
    bi = jax.random.uniform(k_bi, (Cout,), jnp.float32, -bound, bound)

    # Plain-JAX reference of the PyTorch forward.
    def conv_ref(xp, w, b):
        y = lax.conv_general_dilated(
            xp, w, window_strides=(1, 1), padding=[(0, 0), (0, 0)],
            rhs_dilation=(1, 1), dimension_numbers=("NCHW", "OIHW", "NCHW"))
        return y + b[None, :, None, None]

    xr_ref = jnp.real(x).astype(jnp.float32)
    xi_ref = jnp.imag(x).astype(jnp.float32)
    ref = lax.complex(
        conv_ref(xr_ref, wr, br) - conv_ref(xi_ref, wi, bi),
        conv_ref(xi_ref, wr, br) + conv_ref(xr_ref, wi, bi),
    ).astype(jnp.complex64)

    Ho = Wo = H - ksz + 1

    # Exact structural check with f32 operands (tight tolerance).
    out_f32 = complex_conv2d(x, wr, br, wi, bi, stride=1, padding=0, dilation=1,
                             compute_dtype=jnp.float32)
    out_f32 = jax.block_until_ready(out_f32)
    assert out_f32.shape == (N, Cout, Ho, Wo)
    assert out_f32.dtype == jnp.complex64
    assert jnp.allclose(out_f32, ref, atol=1e-4, rtol=1e-4), "f32 mismatch vs reference"

    # Default performance path: bf16 operands, f32 accumulation (looser tolerance
    # accounts only for the bf16 input/weight rounding).
    out_bf16 = complex_conv2d(x, wr, br, wi, bi, stride=1, padding=0, dilation=1)
    out_bf16 = jax.block_until_ready(out_bf16)
    assert out_bf16.shape == (N, Cout, Ho, Wo)
    assert out_bf16.dtype == jnp.complex64
    assert jnp.allclose(out_bf16, ref, atol=3e-2, rtol=3e-2), "bf16 mismatch vs reference"

    print("KERNEL_OK")
</pallas_src>

<mosaic_0001>
module attributes {stable_mosaic.version = 11 : i64} {
  func.func @_cconv_kernel_single_k(%arg0: i32, %arg1: memref<400x128xf32, #tpu.memory_space<vmem>>, %arg2: memref<400x128xf32, #tpu.memory_space<vmem>>, %arg3: memref<128x128xf32, #tpu.memory_space<vmem>>, %arg4: memref<128x128xf32, #tpu.memory_space<vmem>>, %arg5: memref<1x128xf32, #tpu.memory_space<vmem>>, %arg6: memref<1x128xf32, #tpu.memory_space<vmem>>, %arg7: memref<400x128xf32, #tpu.memory_space<vmem>>, %arg8: memref<400x128xf32, #tpu.memory_space<vmem>>) attributes {dimension_semantics = [#tpu.dimension_semantics<parallel>], iteration_bounds = array<i64: 1>, scalar_prefetch = 0 : i64, scratch_operands = 0 : i64, tpu.core_type = #tpu.core_type<tc>, window_params = [{transform_indices = @transform_0, window_bounds = array<i64: 400, 128>}, {transform_indices = @transform_1, window_bounds = array<i64: 400, 128>}, {pipeline_mode = #tpu.pipeline_mode<synchronous>, transform_indices = @transform_2, window_bounds = array<i64: 128, 128>}, {pipeline_mode = #tpu.pipeline_mode<synchronous>, transform_indices = @transform_3, window_bounds = array<i64: 128, 128>}, {pipeline_mode = #tpu.pipeline_mode<synchronous>, transform_indices = @transform_4, window_bounds = array<i64: 1, 128>}, {pipeline_mode = #tpu.pipeline_mode<synchronous>, transform_indices = @transform_5, window_bounds = array<i64: 1, 128>}, {transform_indices = @transform_6, window_bounds = array<i64: 400, 128>}, {transform_indices = @transform_7, window_bounds = array<i64: 400, 128>}]} {
    %c0 = arith.constant 0 : index
    %c0_0 = arith.constant 0 : index
    %0 = vector.load %arg1[%c0, %c0_0] : memref<400x128xf32, #tpu.memory_space<vmem>>, vector<400x128xf32>
    %c0_1 = arith.constant 0 : index
    %c0_2 = arith.constant 0 : index
    %1 = vector.load %arg2[%c0_1, %c0_2] : memref<400x128xf32, #tpu.memory_space<vmem>>, vector<400x128xf32>
    %c0_3 = arith.constant 0 : index
    %c0_4 = arith.constant 0 : index
    %2 = vector.load %arg3[%c0_3, %c0_4] : memref<128x128xf32, #tpu.memory_space<vmem>>, vector<128x128xf32>
    %c0_5 = arith.constant 0 : index
    %c0_6 = arith.constant 0 : index
    %3 = vector.load %arg4[%c0_5, %c0_6] : memref<128x128xf32, #tpu.memory_space<vmem>>, vector<128x128xf32>
    %cst = arith.constant dense<0.000000e+00> : vector<400x128xf32>
    %4 = tpu.matmul %0, %2, %cst {dimension_numbers = #tpu.dot_dimension_numbers<[1], [0], [0], [1], [0, 0, 1, 1], [], []>} : vector<400x128xf32>, vector<128x128xf32>, vector<400x128xf32> -> vector<400x128xf32>
    %cst_7 = arith.constant dense<0.000000e+00> : vector<400x128xf32>
    %5 = tpu.matmul %1, %3, %cst_7 {dimension_numbers = #tpu.dot_dimension_numbers<[1], [0], [0], [1], [0, 0, 1, 1], [], []>} : vector<400x128xf32>, vector<128x128xf32>, vector<400x128xf32> -> vector<400x128xf32>
    %cst_8 = arith.constant dense<0.000000e+00> : vector<400x128xf32>
    %6 = tpu.matmul %0, %3, %cst_8 {dimension_numbers = #tpu.dot_dimension_numbers<[1], [0], [0], [1], [0, 0, 1, 1], [], []>} : vector<400x128xf32>, vector<128x128xf32>, vector<400x128xf32> -> vector<400x128xf32>
    %cst_9 = arith.constant dense<0.000000e+00> : vector<400x128xf32>
    %7 = tpu.matmul %1, %2, %cst_9 {dimension_numbers = #tpu.dot_dimension_numbers<[1], [0], [0], [1], [0, 0, 1, 1], [], []>} : vector<400x128xf32>, vector<128x128xf32>, vector<400x128xf32> -> vector<400x128xf32>
    %8 = arith.subf %4, %5 : vector<400x128xf32>
    %c0_10 = arith.constant 0 : index
    %c0_11 = arith.constant 0 : index
    %9 = vector.load %arg5[%c0_10, %c0_11] : memref<1x128xf32, #tpu.memory_space<vmem>>, vector<1x128xf32>
    %10 = vector.broadcast %9 : vector<1x128xf32> to vector<400x128xf32>
    %11 = arith.addf %8, %10 : vector<400x128xf32>
    %c0_12 = arith.constant 0 : index
    %c0_13 = arith.constant 0 : index
    %12 = vector.load %arg7[%c0_12, %c0_13] : memref<400x128xf32, #tpu.memory_space<vmem>>, vector<400x128xf32>
    tpu.vector_store %arg7[%c0_12, %c0_13], %11 {strides = array<i32>} : memref<400x128xf32, #tpu.memory_space<vmem>>, vector<400x128xf32>,
    %13 = arith.addf %6, %7 : vector<400x128xf32>
    %c0_14 = arith.constant 0 : index
    %c0_15 = arith.constant 0 : index
    %14 = vector.load %arg6[%c0_14, %c0_15] : memref<1x128xf32, #tpu.memory_space<vmem>>, vector<1x128xf32>
    %15 = vector.broadcast %14 : vector<1x128xf32> to vector<400x128xf32>
    %16 = arith.addf %13, %15 : vector<400x128xf32>
    %c0_16 = arith.constant 0 : index
    %c0_17 = arith.constant 0 : index
    %17 = vector.load %arg8[%c0_16, %c0_17] : memref<400x128xf32, #tpu.memory_space<vmem>>, vector<400x128xf32>
    tpu.vector_store %arg8[%c0_16, %c0_17], %16 {strides = array<i32>} : memref<400x128xf32, #tpu.memory_space<vmem>>, vector<400x128xf32>,
    return
  }
  func.func @transform_0(%arg0: i32) -> (i32, i32) {
    %c0_i32 = arith.constant 0 : i32
    %c0_i32_0 = arith.constant 0 : i32
    return %arg0, %c0_i32 : i32, i32
  }
  func.func @transform_1(%arg0: i32) -> (i32, i32) {
    %c0_i32 = arith.constant 0 : i32
    %c0_i32_0 = arith.constant 0 : i32
    return %arg0, %c0_i32 : i32, i32
  }
  func.func @transform_2(%arg0: i32) -> (i32, i32) {
    %c0_i32 = arith.constant 0 : i32
    %c0_i32_0 = arith.constant 0 : i32
    %c0_i32_1 = arith.constant 0 : i32
    return %c0_i32, %c0_i32_0 : i32, i32
  }
  func.func @transform_3(%arg0: i32) -> (i32, i32) {
    %c0_i32 = arith.constant 0 : i32
    %c0_i32_0 = arith.constant 0 : i32
    %c0_i32_1 = arith.constant 0 : i32
    return %c0_i32, %c0_i32_0 : i32, i32
  }
  func.func @transform_4(%arg0: i32) -> (i32, i32) {
    %c0_i32 = arith.constant 0 : i32
    %c0_i32_0 = arith.constant 0 : i32
    %c0_i32_1 = arith.constant 0 : i32
    return %c0_i32, %c0_i32_0 : i32, i32
  }
  func.func @transform_5(%arg0: i32) -> (i32, i32) {
    %c0_i32 = arith.constant 0 : i32
    %c0_i32_0 = arith.constant 0 : i32
    %c0_i32_1 = arith.constant 0 : i32
    return %c0_i32, %c0_i32_0 : i32, i32
  }
  func.func @transform_6(%arg0: i32) -> (i32, i32) {
    %c0_i32 = arith.constant 0 : i32
    %c0_i32_0 = arith.constant 0 : i32
    return %arg0, %c0_i32 : i32, i32
  }
  func.func @transform_7(%arg0: i32) -> (i32, i32) {
    %c0_i32 = arith.constant 0 : i32
    %c0_i32_0 = arith.constant 0 : i32
    return %arg0, %c0_i32 : i32, i32
  }
}

</mosaic_0001>

<llo_original>
// kernel: tpu_custom_call.1
$region0: #{tpu_custom_call.1}
  #allocation0 [shape = 'u32[]', space=smem, size = 0x4, offset = 0x4, fixed_abs, tag = 'smem constant byte address 0x4 - core index']
  #allocation1 [shape = 'u32[144,128]{1,0:T(1,128)}', space=vmem, size = 0x12000, scoped, tag = 'internal scratch']
  %s0 = inlined_call_operand.hbm [shape: f32[400,128], index: 0, kind: input, shape index: {}]
  %s1 = inlined_call_operand.hbm [shape: f32[400,128], index: 1, kind: input, shape index: {}]
  %s2 = inlined_call_operand.hbm [shape: f32[128,128], index: 2, kind: input, shape index: {}]
  %s3 = inlined_call_operand.hbm [shape: f32[128,128], index: 3, kind: input, shape index: {}]
  %s4 = inlined_call_operand.vmem [shape: f32[1,128], index: 4, kind: input, shape index: {}]
  %s5 = inlined_call_operand.vmem [shape: f32[1,128], index: 5, kind: input, shape index: {}]
  %s6 = inlined_call_operand.hbm [shape: f32[400,128], index: 6, kind: output, shape index: {0}]
  %s7 = inlined_call_operand.hbm [shape: f32[400,128], index: 7, kind: output, shape index: {1}]
  %8 = xla_tuple %s6, %s7
  %s9 = sld [smem:[#allocation0]]
  $region58: #{tpu_custom_call.1} parent=0
    _
  %s11 = ssub.s32 1, %s9
  %s12 = scalar_select 0, %s11, %s9
  $region1: #{tpu_custom_call.1} parent=0
    #allocation2 [shape = 'u8[204800]{0}', space=vmem, size = 0x32000, scoped, tag = 'input window, operand 0, single buffered']
    #allocation3 [shape = 's32[1]{0}', space=sflag, size = 0x4, scoped, tag = 'scoped memory for tpu_custom_call.1']
    #allocation4 [shape = 's32[1]{0}', space=sflag, size = 0x4, scoped, tag = 'scoped memory for tpu_custom_call.1']
    #allocation5 [shape = 'u8[204800]{0}', space=vmem, size = 0x32000, scoped, tag = 'input window, operand 1, single buffered']
    #allocation6 [shape = 's32[1]{0}', space=sflag, size = 0x4, scoped, tag = 'scoped memory for tpu_custom_call.1']
    #allocation7 [shape = 'u8[65536]{0}', space=vmem, size = 0x10000, scoped, tag = 'input window, operand 2, single buffered']
    #allocation8 [shape = 'u8[65536]{0}', space=vmem, size = 0x10000, scoped, tag = 'input window, operand 3, single buffered']
    #allocation9 [shape = 's32[1]{0}', space=sflag, size = 0x4, scoped, tag = 'scoped memory for tpu_custom_call.1']
    #allocation10 [shape = 'u8[204800]{0}', space=vmem, size = 0x32000, scoped, tag = 'output window, operand 0, single buffered']
    #allocation11 [shape = 'u8[204800]{0}', space=vmem, size = 0x32000, scoped, tag = 'output window, operand 1, single buffered']
    #allocation12 [shape = 's32[1]{0}', space=sflag, size = 0x4, scoped, tag = 'scoped memory for tpu_custom_call.1']
    %13 = vsyncpa [#allocation3], 0
    %14 = vsyncpa [#allocation6], 0
    %15 = vsyncpa [#allocation9], 0
    %16 = vsyncpa [#allocation4], 0
    %17 = vsyncpa [#allocation12], 0
    // Predicated region
    $region2: #{tpu_custom_call.1} parent=1 // pred_check
      _
    $region3: #{tpu_custom_call.1} parent=1 // pred_check_branch
      %19 = sbr.rel (0) target = $region5
    $region4: #{tpu_custom_call.1} parent=1 // pred_region
      %s21 = ssub.s32 6400, 6400
      %22 = vsyncadd [#allocation3], %s21
      %s23 = sshll.u32 [#allocation2], 4
      %s24 = int_to_ptr.vmem [resolvable:$true] %s23
      %29 = dma.hbm_to_vmem [thread:$0]  %s0, 6400, %s24, [#allocation3], 128, 128, 8
    $region5: #{tpu_custom_call.1} parent=1 // pred_fallthru
      _
    // Predicated region
    $region6: #{tpu_custom_call.1} parent=1 // pred_check
      _
    $region7: #{tpu_custom_call.1} parent=1 // pred_check_branch
      %31 = sbr.rel (0) target = $region9
    $region8: #{tpu_custom_call.1} parent=1 // pred_region
      %s33 = ssub.s32 6400, 6400
      %34 = vsyncadd [#allocation6], %s33
      %s35 = sshll.u32 [#allocation5], 4
      %s36 = int_to_ptr.vmem [resolvable:$true] %s35
      %41 = dma.hbm_to_vmem [thread:$0]  %s1, 6400, %s36, [#allocation6], 128, 128, 8
    $region9: #{tpu_custom_call.1} parent=1 // pred_fallthru
      _
    // Predicated region
    $region10: #{tpu_custom_call.1} parent=1 // pred_check
      _
    $region11: #{tpu_custom_call.1} parent=1 // pred_check_branch
      %43 = sbr.rel (0) target = $region13
    $region12: #{tpu_custom_call.1} parent=1 // pred_region
      %s45 = ssub.s32 2048, 2048
      %46 = vsyncadd [#allocation6], %s45
      %s47 = sshll.u32 [#allocation7], 4
      %s48 = int_to_ptr.vmem [resolvable:$true] %s47
      %53 = dma.hbm_to_vmem [thread:$0]  %s2, 2048, %s48, [#allocation6], 128, 128, 8
    $region13: #{tpu_custom_call.1} parent=1 // pred_fallthru
      _
    // Predicated region
    $region14: #{tpu_custom_call.1} parent=1 // pred_check
      _
    $region15: #{tpu_custom_call.1} parent=1 // pred_check_branch
      %55 = sbr.rel (0) target = $region17
    $region16: #{tpu_custom_call.1} parent=1 // pred_region
      %s57 = ssub.s32 2048, 2048
      %58 = vsyncadd [#allocation9], %s57
      %s59 = sshll.u32 [#allocation8], 4
      %s60 = int_to_ptr.vmem [resolvable:$true] %s59
      %65 = dma.hbm_to_vmem [thread:$0]  %s3, 2048, %s60, [#allocation9], 128, 128, 8
    $region17: #{tpu_custom_call.1} parent=1 // pred_fallthru
      _
    // Predicated region
    $region18: #{tpu_custom_call.1} parent=1 // pred_check
      _
    $region19: #{tpu_custom_call.1} parent=1 // pred_check_branch
      %67 = sbr.rel (0) target = $region21
    $region20: #{tpu_custom_call.1} parent=1 // pred_region
      _
    $region21: #{tpu_custom_call.1} parent=1 // pred_fallthru
      _
    // Predicated region
    $region22: #{tpu_custom_call.1} parent=1 // pred_check
      _
    $region23: #{tpu_custom_call.1} parent=1 // pred_check_branch
      %69 = sbr.rel (0) target = $region25
    $region24: #{tpu_custom_call.1} parent=1 // pred_region
      _
    $region25: #{tpu_custom_call.1} parent=1 // pred_fallthru
      _
    // Predicated region
    $region26: #{tpu_custom_call.1} parent=1 // pred_check
      _
    $region27: #{tpu_custom_call.1} parent=1 // pred_check_branch
      %71 = sbr.rel (0) target = $region29
    $region28: #{tpu_custom_call.1} parent=1 // pred_region
      %72 = dma.done [#allocation3], 6400
    $region29: #{tpu_custom_call.1} parent=1 // pred_fallthru
      _
    // Predicated region
    $region30: #{tpu_custom_call.1} parent=1 // pred_check
      _
    $region31: #{tpu_custom_call.1} parent=1 // pred_check_branch
      %74 = sbr.rel (0) target = $region33
    $region32: #{tpu_custom_call.1} parent=1 // pred_region
      %75 = dma.done [#allocation6], 6400
    $region33: #{tpu_custom_call.1} parent=1 // pred_fallthru
      _
    // Predicated region
    $region34: #{tpu_custom_call.1} parent=1 // pred_check
      _
    $region35: #{tpu_custom_call.1} parent=1 // pred_check_branch
      %77 = sbr.rel (0) target = $region37
    $region36: #{tpu_custom_call.1} parent=1 // pred_region
      %78 = dma.done [#allocation6], 2048
    $region37: #{tpu_custom_call.1} parent=1 // pred_fallthru
      _
    // Predicated region
    $region38: #{tpu_custom_call.1} parent=1 // pred_check
      _
    $region39: #{tpu_custom_call.1} parent=1 // pred_check_branch
      %80 = sbr.rel (0) target = $region41
    $region40: #{tpu_custom_call.1} parent=1 // pred_region
      %81 = dma.done [#allocation9], 2048
    $region41: #{tpu_custom_call.1} parent=1 // pred_fallthru
      _
    %v82 = vld [vmem:[#allocation2] sm:$0xff]
    %v83 = vld [vmem:[#allocation2 + $0x8] sm:$0xff]
    %v84 = vld [vmem:[#allocation2 + $0x10] sm:$0xff]
    %v85 = vld [vmem:[#allocation2 + $0x18] sm:$0xff]
    %v86 = vld [vmem:[#allocation2 + $0x20] sm:$0xff]
    %v87 = vld [vmem:[#allocation2 + $0x28] sm:$0xff]
    %v88 = vld [vmem:[#allocation2 + $0x30] sm:$0xff]
    %v89 = vld [vmem:[#allocation2 + $0x38] sm:$0xff]
    %v90 = vld [vmem:[#allocation2 + $0x40] sm:$0xff]
    %v91 = vld [vmem:[#allocation2 + $0x48] sm:$0xff]
    %v92 = vld [vmem:[#allocation2 + $0x50] sm:$0xff]
    %v93 = vld [vmem:[#allocation2 + $0x58] sm:$0xff]
    %v94 = vld [vmem:[#allocation2 + $0x60] sm:$0xff]
    %v95 = vld [vmem:[#allocation2 + $0x68] sm:$0xff]
    %v96 = vld [vmem:[#allocation2 + $0x70] sm:$0xff]
    %v97 = vld [vmem:[#allocation2 + $0x78] sm:$0xff]
    %v98 = vld [vmem:[#allocation2 + $0x80] sm:$0xff]
    %v99 = vld [vmem:[#allocation2 + $0x88] sm:$0xff]
    %v100 = vld [vmem:[#allocation2 + $0x90] sm:$0xff]
    %v101 = vld [vmem:[#allocation2 + $0x98] sm:$0xff]
    %v102 = vld [vmem:[#allocation2 + $0xa0] sm:$0xff]
    %v103 = vld [vmem:[#allocation2 + $0xa8] sm:$0xff]
    %v104 = vld [vmem:[#allocation2 + $0xb0] sm:$0xff]
    %v105 = vld [vmem:[#allocation2 + $0xb8] sm:$0xff]
    %v106 = vld [vmem:[#allocation2 + $0xc0] sm:$0xff]
    %v107 = vld [vmem:[#allocation2 + $0xc8] sm:$0xff]
    %v108 = vld [vmem:[#allocation2 + $0xd0] sm:$0xff]
    %v109 = vld [vmem:[#allocation2 + $0xd8] sm:$0xff]
    %v110 = vld [vmem:[#allocation2 + $0xe0] sm:$0xff]
    %v111 = vld [vmem:[#allocation2 + $0xe8] sm:$0xff]
    %v112 = vld [vmem:[#allocation2 + $0xf0] sm:$0xff]
    %v113 = vld [vmem:[#allocation2 + $0xf8] sm:$0xff]
    %v114 = vld [vmem:[#allocation2 + $0x100] sm:$0xff]
    %v115 = vld [vmem:[#allocation2 + $0x108] sm:$0xff]
    %v116 = vld [vmem:[#allocation2 + $0x110] sm:$0xff]
    %v117 = vld [vmem:[#allocation2 + $0x118] sm:$0xff]
    %v118 = vld [vmem:[#allocation2 + $0x120] sm:$0xff]
    %v119 = vld [vmem:[#allocation2 + $0x128] sm:$0xff]
    %v120 = vld [vmem:[#allocation2 + $0x130] sm:$0xff]
    %v121 = vld [vmem:[#allocation2 + $0x138] sm:$0xff]
    %v122 = vld [vmem:[#allocation2 + $0x140] sm:$0xff]
    %v123 = vld [vmem:[#allocation2 + $0x148] sm:$0xff]
    %v124 = vld [vmem:[#allocation2 + $0x150] sm:$0xff]
    %v125 = vld [vmem:[#allocation2 + $0x158] sm:$0xff]
    %v126 = vld [vmem:[#allocation2 + $0x160] sm:$0xff]
    %v127 = vld [vmem:[#allocation2 + $0x168] sm:$0xff]
    %v128 = vld [vmem:[#allocation2 + $0x170] sm:$0xff]
    %v129 = vld [vmem:[#allocation2 + $0x178] sm:$0xff]
    %v130 = vld [vmem:[#allocation2 + $0x180] sm:$0xff]
    %v131 = vld [vmem:[#allocation2 + $0x188] sm:$0xff]
    %v132 = vld [vmem:[#allocation5] sm:$0xff]
    %v133 = vld [vmem:[#allocation5 + $0x8] sm:$0xff]
    %v134 = vld [vmem:[#allocation5 + $0x10] sm:$0xff]
    %v135 = vld [vmem:[#allocation5 + $0x18] sm:$0xff]
    %v136 = vld [vmem:[#allocation5 + $0x20] sm:$0xff]
    %v137 = vld [vmem:[#allocation5 + $0x28] sm:$0xff]
    %v138 = vld [vmem:[#allocation5 + $0x30] sm:$0xff]
    %v139 = vld [vmem:[#allocation5 + $0x38] sm:$0xff]
    %v140 = vld [vmem:[#allocation5 + $0x40] sm:$0xff]
    %v141 = vld [vmem:[#allocation5 + $0x48] sm:$0xff]
    %v142 = vld [vmem:[#allocation5 + $0x50] sm:$0xff]
    %v143 = vld [vmem:[#allocation5 + $0x58] sm:$0xff]
    %v144 = vld [vmem:[#allocation5 + $0x60] sm:$0xff]
    %v145 = vld [vmem:[#allocation5 + $0x68] sm:$0xff]
    %v146 = vld [vmem:[#allocation5 + $0x70] sm:$0xff]
    %v147 = vld [vmem:[#allocation5 + $0x78] sm:$0xff]
    %v148 = vld [vmem:[#allocation5 + $0x80] sm:$0xff]
    %v149 = vld [vmem:[#allocation5 + $0x88] sm:$0xff]
    %v150 = vld [vmem:[#allocation5 + $0x90] sm:$0xff]
    %v151 = vld [vmem:[#allocation5 + $0x98] sm:$0xff]
    %v152 = vld [vmem:[#allocation5 + $0xa0] sm:$0xff]
    %v153 = vld [vmem:[#allocation5 + $0xa8] sm:$0xff]
    %v154 = vld [vmem:[#allocation5 + $0xb0] sm:$0xff]
    %v155 = vld [vmem:[#allocation5 + $0xb8] sm:$0xff]
    %v156 = vld [vmem:[#allocation5 + $0xc0] sm:$0xff]
    %v157 = vld [vmem:[#allocation5 + $0xc8] sm:$0xff]
    %v158 = vld [vmem:[#allocation5 + $0xd0] sm:$0xff]
    %v159 = vld [vmem:[#allocation5 + $0xd8] sm:$0xff]
    %v160 = vld [vmem:[#allocation5 + $0xe0] sm:$0xff]
    %v161 = vld [vmem:[#allocation5 + $0xe8] sm:$0xff]
    %v162 = vld [vmem:[#allocation5 + $0xf0] sm:$0xff]
    %v163 = vld [vmem:[#allocation5 + $0xf8] sm:$0xff]
    %v164 = vld [vmem:[#allocation5 + $0x100] sm:$0xff]
    %v165 = vld [vmem:[#allocation5 + $0x108] sm:$0xff]
    %v166 = vld [vmem:[#allocation5 + $0x110] sm:$0xff]
    %v167 = vld [vmem:[#allocation5 + $0x118] sm:$0xff]
    %v168 = vld [vmem:[#allocation5 + $0x120] sm:$0xff]
    %v169 = vld [vmem:[#allocation5 + $0x128] sm:$0xff]
    %v170 = vld [vmem:[#allocation5 + $0x130] sm:$0xff]
    %v171 = vld [vmem:[#allocation5 + $0x138] sm:$0xff]
    %v172 = vld [vmem:[#allocation5 + $0x140] sm:$0xff]
    %v173 = vld [vmem:[#allocation5 + $0x148] sm:$0xff]
    %v174 = vld [vmem:[#allocation5 + $0x150] sm:$0xff]
    %v175 = vld [vmem:[#allocation5 + $0x158] sm:$0xff]
    %v176 = vld [vmem:[#allocation5 + $0x160] sm:$0xff]
    %v177 = vld [vmem:[#allocation5 + $0x168] sm:$0xff]
    %v178 = vld [vmem:[#allocation5 + $0x170] sm:$0xff]
    %v179 = vld [vmem:[#allocation5 + $0x178] sm:$0xff]
    %v180 = vld [vmem:[#allocation5 + $0x180] sm:$0xff]
    %v181 = vld [vmem:[#allocation5 + $0x188] sm:$0xff]
    %v182 = vld [vmem:[#allocation7] sm:$0xff]
    %v183 = vld [vmem:[#allocation7 + $0x8] sm:$0xff]
    %v184 = vld [vmem:[#allocation7 + $0x10] sm:$0xff]
    %v185 = vld [vmem:[#allocation7 + $0x18] sm:$0xff]
    %v186 = vld [vmem:[#allocation7 + $0x20] sm:$0xff]
    %v187 = vld [vmem:[#allocation7 + $0x28] sm:$0xff]
    %v188 = vld [vmem:[#allocation7 + $0x30] sm:$0xff]
    %v189 = vld [vmem:[#allocation7 + $0x38] sm:$0xff]
    %v190 = vld [vmem:[#allocation7 + $0x40] sm:$0xff]
    %v191 = vld [vmem:[#allocation7 + $0x48] sm:$0xff]
    %v192 = vld [vmem:[#allocation7 + $0x50] sm:$0xff]
    %v193 = vld [vmem:[#allocation7 + $0x58] sm:$0xff]
    %v194 = vld [vmem:[#allocation7 + $0x60] sm:$0xff]
    %v195 = vld [vmem:[#allocation7 + $0x68] sm:$0xff]
    %v196 = vld [vmem:[#allocation7 + $0x70] sm:$0xff]
    %v197 = vld [vmem:[#allocation7 + $0x78] sm:$0xff]
    %v198 = vld [vmem:[#allocation8] sm:$0xff]
    %v199 = vld [vmem:[#allocation8 + $0x8] sm:$0xff]
    %v200 = vld [vmem:[#allocation8 + $0x10] sm:$0xff]
    %v201 = vld [vmem:[#allocation8 + $0x18] sm:$0xff]
    %v202 = vld [vmem:[#allocation8 + $0x20] sm:$0xff]
    %v203 = vld [vmem:[#allocation8 + $0x28] sm:$0xff]
    %v204 = vld [vmem:[#allocation8 + $0x30] sm:$0xff]
    %v205 = vld [vmem:[#allocation8 + $0x38] sm:$0xff]
    %v206 = vld [vmem:[#allocation8 + $0x40] sm:$0xff]
    %v207 = vld [vmem:[#allocation8 + $0x48] sm:$0xff]
    %v208 = vld [vmem:[#allocation8 + $0x50] sm:$0xff]
    %v209 = vld [vmem:[#allocation8 + $0x58] sm:$0xff]
    %v210 = vld [vmem:[#allocation8 + $0x60] sm:$0xff]
    %v211 = vld [vmem:[#allocation8 + $0x68] sm:$0xff]
    %v212 = vld [vmem:[#allocation8 + $0x70] sm:$0xff]
    %v213 = vld [vmem:[#allocation8 + $0x78] sm:$0xff]
    %214 = vmatprep.subr.mxu0 0.0
    %215 = vmatpush1.msra.mxu0 %v182
    %216 = vmatprep.subr.mxu0 0.0
    %217 = vmatpush1.msra.mxu0 %v183
    %218 = vmatprep.subr.mxu0 0.0
    %219 = vmatpush1.msra.mxu0 %v184
    %220 = vmatprep.subr.mxu0 0.0
    %221 = vmatpush1.msra.mxu0 %v185
    %222 = vmatprep.subr.mxu0 0.0
    %223 = vmatpush1.msra.mxu0 %v186
    %224 = vmatprep.subr.mxu0 0.0
    %225 = vmatpush1.msra.mxu0 %v187
    %226 = vmatprep.subr.mxu0 0.0
    %227 = vmatpush1.msra.mxu0 %v188
    %228 = vmatprep.subr.mxu0 0.0
    %229 = vmatpush1.msra.mxu0 %v189
    %230 = vmatprep.subr.mxu0 0.0
    %231 = vmatpush1.msra.mxu0 %v190
    %232 = vmatprep.subr.mxu0 0.0
    %233 = vmatpush1.msra.mxu0 %v191
    %234 = vmatprep.subr.mxu0 0.0
    %235 = vmatpush1.msra.mxu0 %v192
    %236 = vmatprep.subr.mxu0 0.0
    %237 = vmatpush1.msra.mxu0 %v193
    %238 = vmatprep.subr.mxu0 0.0
    %239 = vmatpush1.msra.mxu0 %v194
    %240 = vmatprep.subr.mxu0 0.0
    %241 = vmatpush1.msra.mxu0 %v195
    %242 = vmatprep.subr.mxu0 0.0
    %243 = vmatpush1.msra.mxu0 %v196
    %244 = vmatprep.subr.mxu0 0.0
    %245 = vmatpush1.msra.mxu0 %v197
    %246 = vmatprep.subr.mxu0 0.0
    %247 = vmatpush1.msra.mxu0 0.0
    %248 = vmatprep.subr.mxu0 0.0
    %249 = vmatpush1.msra.mxu0 0.0
    %250 = vmatprep.subr.mxu0 0.0
    %251 = vmatpush1.msra.mxu0 0.0
    %252 = vmatprep.subr.mxu0 0.0
    %253 = vmatpush1.msra.mxu0 0.0
    %254 = vmatprep.subr.mxu0 0.0
    %255 = vmatpush1.msra.mxu0 0.0
    %256 = vmatprep.subr.mxu0 0.0
    %257 = vmatpush1.msra.mxu0 0.0
    %258 = vmatprep.subr.mxu0 0.0
    %259 = vmatpush1.msra.mxu0 0.0
    %260 = vmatprep.subr.mxu0 0.0
    %261 = vmatpush1.msra.mxu0 0.0
    %262 = vmatprep.subr.mxu0 0.0
    %263 = vmatpush1.msra.mxu0 0.0
    %264 = vmatprep.subr.mxu0 0.0
    %265 = vmatpush1.msra.mxu0 0.0
    %266 = vmatprep.subr.mxu0 0.0
    %267 = vmatpush1.msra.mxu0 0.0
    %268 = vmatprep.subr.mxu0 0.0
    %269 = vmatpush1.msra.mxu0 0.0
    %270 = vmatprep.subr.mxu0 0.0
    %271 = vmatpush1.msra.mxu0 0.0
    %272 = vmatprep.subr.mxu0 0.0
    %273 = vmatpush1.msra.mxu0 0.0
    %274 = vmatprep.subr.mxu0 0.0
    %275 = vmatpush1.msra.mxu0 0.0
    %276 = vmatprep.subr.mxu0 0.0
    %277 = vmatpush1.msra.mxu0 0.0
    %278 = vmatprep.mubr.f32.mxu0 0.0
    %279 = vmatmul.mubr.f32.gmra.mrb[0].mxu0 %v82
    %v280 = vpop.f32.mrb[0].mxu0
    %v281 = vadd.f32 0.0, %v280
    %v282 = vpop.f32.mrb[0].mxu0
    %283 = vmatprep.mubr.f32.mxu0 0.0
    %284 = vmatmul.mubr.f32.gmra.mrb[0].mxu0 %v83
    %v285 = vpop.f32.mrb[0].mxu0
    %v286 = vadd.f32 0.0, %v285
    %v287 = vpop.f32.mrb[0].mxu0
    %288 = vmatprep.mubr.f32.mxu0 0.0
    %289 = vmatmul.mubr.f32.gmra.mrb[0].mxu0 %v84
    %v290 = vpop.f32.mrb[0].mxu0
    %v291 = vadd.f32 0.0, %v290
    %v292 = vpop.f32.mrb[0].mxu0
    %293 = vmatprep.mubr.f32.mxu0 0.0
    %294 = vmatmul.mubr.f32.gmra.mrb[0].mxu0 %v85
    %v295 = vpop.f32.mrb[0].mxu0
    %v296 = vadd.f32 0.0, %v295
    %v297 = vpop.f32.mrb[0].mxu0
    %298 = vmatprep.mubr.f32.mxu0 0.0
    %299 = vmatmul.mubr.f32.gmra.mrb[0].mxu0 %v86
    %v300 = vpop.f32.mrb[0].mxu0
    %v301 = vadd.f32 0.0, %v300
    %v302 = vpop.f32.mrb[0].mxu0
    %303 = vmatprep.mubr.f32.mxu0 0.0
    %304 = vmatmul.mubr.f32.gmra.mrb[0].mxu0 %v87
    %v305 = vpop.f32.mrb[0].mxu0
    %v306 = vadd.f32 0.0, %v305
    %v307 = vpop.f32.mrb[0].mxu0
    %308 = vmatprep.mubr.f32.mxu0 0.0
    %309 = vmatmul.mubr.f32.gmra.mrb[0].mxu0 %v88
    %v310 = vpop.f32.mrb[0].mxu0
    %v311 = vadd.f32 0.0, %v310
    %v312 = vpop.f32.mrb[0].mxu0
    %313 = vmatprep.mubr.f32.mxu0 0.0
    %314 = vmatmul.mubr.f32.gmra.mrb[0].mxu0 %v89
    %v315 = vpop.f32.mrb[0].mxu0
    %v316 = vadd.f32 0.0, %v315
    %v317 = vpop.f32.mrb[0].mxu0
    %318 = vmatprep.mubr.f32.mxu0 0.0
    %319 = vmatmul.mubr.f32.gmra.mrb[0].mxu0 %v90
    %v320 = vpop.f32.mrb[0].mxu0
    %v321 = vadd.f32 0.0, %v320
    %v322 = vpop.f32.mrb[0].mxu0
    %323 = vmatprep.mubr.f32.mxu0 0.0
    %324 = vmatmul.mubr.f32.gmra.mrb[0].mxu0 %v91
    %v325 = vpop.f32.mrb[0].mxu0
    %v326 = vadd.f32 0.0, %v325
    %v327 = vpop.f32.mrb[0].mxu0
    %328 = vmatprep.mubr.f32.mxu0 0.0
    %329 = vmatmul.mubr.f32.gmra.mrb[0].mxu0 %v92
    %v330 = vpop.f32.mrb[0].mxu0
    %v331 = vadd.f32 0.0, %v330
    %v332 = vpop.f32.mrb[0].mxu0
    %333 = vmatprep.mubr.f32.mxu0 0.0
    %334 = vmatmul.mubr.f32.gmra.mrb[0].mxu0 %v93
    %v335 = vpop.f32.mrb[0].mxu0
    %v336 = vadd.f32 0.0, %v335
    %v337 = vpop.f32.mrb[0].mxu0
    %338 = vmatprep.mubr.f32.mxu0 0.0
    %339 = vmatmul.mubr.f32.gmra.mrb[0].mxu0 %v94
    %v340 = vpop.f32.mrb[0].mxu0
    %v341 = vadd.f32 0.0, %v340
    %v342 = vpop.f32.mrb[0].mxu0
    %343 = vmatprep.mubr.f32.mxu0 0.0
    %344 = vmatmul.mubr.f32.gmra.mrb[0].mxu0 %v95
    %v345 = vpop.f32.mrb[0].mxu0
    %v346 = vadd.f32 0.0, %v345
    %v347 = vpop.f32.mrb[0].mxu0
    %348 = vmatprep.mubr.f32.mxu0 0.0
    %349 = vmatmul.mubr.f32.gmra.mrb[0].mxu0 %v96
    %v350 = vpop.f32.mrb[0].mxu0
    %v351 = vadd.f32 0.0, %v350
    %v352 = vpop.f32.mrb[0].mxu0
    %353 = vmatprep.mubr.f32.mxu0 0.0
    %354 = vmatmul.mubr.f32.gmra.mrb[0].mxu0 %v97
    %v355 = vpop.f32.mrb[0].mxu0
    %v356 = vadd.f32 0.0, %v355
    %v357 = vpop.f32.mrb[0].mxu0
    %358 = vmatprep.mubr.f32.mxu0 0.0
    %359 = vmatmul.mubr.f32.gmra.mrb[0].mxu0 %v98
    %v360 = vpop.f32.mrb[0].mxu0
    %v361 = vadd.f32 0.0, %v360
    %v362 = vpop.f32.mrb[0].mxu0
    %363 = vmatprep.mubr.f32.mxu0 0.0
    %364 = vmatmul.mubr.f32.gmra.mrb[0].mxu0 %v99
    %v365 = vpop.f32.mrb[0].mxu0
    %v366 = vadd.f32 0.0, %v365
    %v367 = vpop.f32.mrb[0].mxu0
    %368 = vmatprep.mubr.f32.mxu0 0.0
    %369 = vmatmul.mubr.f32.gmra.mrb[0].mxu0 %v100
    %v370 = vpop.f32.mrb[0].mxu0
    %v371 = vadd.f32 0.0, %v370
    %v372 = vpop.f32.mrb[0].mxu0
    %373 = vmatprep.mubr.f32.mxu0 0.0
    %374 = vmatmul.mubr.f32.gmra.mrb[0].mxu0 %v101
    %v375 = vpop.f32.mrb[0].mxu0
    %v376 = vadd.f32 0.0, %v375
    %v377 = vpop.f32.mrb[0].mxu0
    %378 = vmatprep.mubr.f32.mxu0 0.0
    %379 = vmatmul.mubr.f32.gmra.mrb[0].mxu0 %v102
    %v380 = vpop.f32.mrb[0].mxu0
    %v381 = vadd.f32 0.0, %v380
    %v382 = vpop.f32.mrb[0].mxu0
    %383 = vmatprep.mubr.f32.mxu0 0.0
    %384 = vmatmul.mubr.f32.gmra.mrb[0].mxu0 %v103
    %v385 = vpop.f32.mrb[0].mxu0
    %v386 = vadd.f32 0.0, %v385
    %v387 = vpop.f32.mrb[0].mxu0
    %388 = vmatprep.mubr.f32.mxu0 0.0
    %389 = vmatmul.mubr.f32.gmra.mrb[0].mxu0 %v104
    %v390 = vpop.f32.mrb[0].mxu0
    %v391 = vadd.f32 0.0, %v390
    %v392 = vpop.f32.mrb[0].mxu0
    %393 = vmatprep.mubr.f32.mxu0 0.0
    %394 = vmatmul.mubr.f32.gmra.mrb[0].mxu0 %v105
    %v395 = vpop.f32.mrb[0].mxu0
    %v396 = vadd.f32 0.0, %v395
    %v397 = vpop.f32.mrb[0].mxu0
    %398 = vmatprep.mubr.f32.mxu0 0.0
    %399 = vmatmul.mubr.f32.gmra.mrb[0].mxu0 %v106
    %v400 = vpop.f32.mrb[0].mxu0
    %v401 = vadd.f32 0.0, %v400
    %v402 = vpop.f32.mrb[0].mxu0
    %403 = vmatprep.mubr.f32.mxu0 0.0
    %404 = vmatmul.mubr.f32.gmra.mrb[0].mxu0 %v107
    %v405 = vpop.f32.mrb[0].mxu0
    %v406 = vadd.f32 0.0, %v405
    %v407 = vpop.f32.mrb[0].mxu0
    %408 = vmatprep.mubr.f32.mxu0 0.0
    %409 = vmatmul.mubr.f32.gmra.mrb[0].mxu0 %v108
    %v410 = vpop.f32.mrb[0].mxu0
    %v411 = vadd.f32 0.0, %v410
    %v412 = vpop.f32.mrb[0].mxu0
    %413 = vmatprep.mubr.f32.mxu0 0.0
    %414 = vmatmul.mubr.f32.gmra.mrb[0].mxu0 %v109
    %v415 = vpop.f32.mrb[0].mxu0
    %v416 = vadd.f32 0.0, %v415
    %v417 = vpop.f32.mrb[0].mxu0
    %418 = vmatprep.mubr.f32.mxu0 0.0
    %419 = vmatmul.mubr.f32.gmra.mrb[0].mxu0 %v110
    %v420 = vpop.f32.mrb[0].mxu0
    %v421 = vadd.f32 0.0, %v420
    %v422 = vpop.f32.mrb[0].mxu0
    %423 = vmatprep.mubr.f32.mxu0 0.0
    %424 = vmatmul.mubr.f32.gmra.mrb[0].mxu0 %v111
    %v425 = vpop.f32.mrb[0].mxu0
    %v426 = vadd.f32 0.0, %v425
    %v427 = vpop.f32.mrb[0].mxu0
    %428 = vmatprep.mubr.f32.mxu0 0.0
    %429 = vmatmul.mubr.f32.gmra.mrb[0].mxu0 %v112
    %v430 = vpop.f32.mrb[0].mxu0
    %v431 = vadd.f32 0.0, %v430
    %v432 = vpop.f32.mrb[0].mxu0
    %433 = vmatprep.mubr.f32.mxu0 0.0
    %434 = vmatmul.mubr.f32.gmra.mrb[0].mxu0 %v113
    %v435 = vpop.f32.mrb[0].mxu0
    %v436 = vadd.f32 0.0, %v435
    %v437 = vpop.f32.mrb[0].mxu0
    %438 = vmatprep.mubr.f32.mxu0 0.0
    %439 = vmatmul.mubr.f32.gmra.mrb[0].mxu0 %v114
    %v440 = vpop.f32.mrb[0].mxu0
    %v441 = vadd.f32 0.0, %v440
    %v442 = vpop.f32.mrb[0].mxu0
    %443 = vmatprep.mubr.f32.mxu0 0.0
    %444 = vmatmul.mubr.f32.gmra.mrb[0].mxu0 %v115
    %v445 = vpop.f32.mrb[0].mxu0
    %v446 = vadd.f32 0.0, %v445
    %v447 = vpop.f32.mrb[0].mxu0
    %448 = vmatprep.mubr.f32.mxu0 0.0
    %449 = vmatmul.mubr.f32.gmra.mrb[0].mxu0 %v116
    %v450 = vpop.f32.mrb[0].mxu0
    %v451 = vadd.f32 0.0, %v450
    %v452 = vpop.f32.mrb[0].mxu0
    %453 = vmatprep.mubr.f32.mxu0 0.0
    %454 = vmatmul.mubr.f32.gmra.mrb[0].mxu0 %v117
    %v455 = vpop.f32.mrb[0].mxu0
    %v456 = vadd.f32 0.0, %v455
    %v457 = vpop.f32.mrb[0].mxu0
    %458 = vmatprep.mubr.f32.mxu0 0.0
    %459 = vmatmul.mubr.f32.gmra.mrb[0].mxu0 %v118
    %v460 = vpop.f32.mrb[0].mxu0
    %v461 = vadd.f32 0.0, %v460
    %v462 = vpop.f32.mrb[0].mxu0
    %463 = vmatprep.mubr.f32.mxu0 0.0
    %464 = vmatmul.mubr.f32.gmra.mrb[0].mxu0 %v119
    %v465 = vpop.f32.mrb[0].mxu0
    %v466 = vadd.f32 0.0, %v465
    %v467 = vpop.f32.mrb[0].mxu0
    %468 = vmatprep.mubr.f32.mxu0 0.0
    %469 = vmatmul.mubr.f32.gmra.mrb[0].mxu0 %v120
    %v470 = vpop.f32.mrb[0].mxu0
    %v471 = vadd.f32 0.0, %v470
    %v472 = vpop.f32.mrb[0].mxu0
    %473 = vmatprep.mubr.f32.mxu0 0.0
    %474 = vmatmul.mubr.f32.gmra.mrb[0].mxu0 %v121
    %v475 = vpop.f32.mrb[0].mxu0
    %v476 = vadd.f32 0.0, %v475
    %v477 = vpop.f32.mrb[0].mxu0
    %478 = vmatprep.mubr.f32.mxu0 0.0
    %479 = vmatmul.mubr.f32.gmra.mrb[0].mxu0 %v122
    %v480 = vpop.f32.mrb[0].mxu0
    %v481 = vadd.f32 0.0, %v480
    %v482 = vpop.f32.mrb[0].mxu0
    %483 = vmatprep.mubr.f32.mxu0 0.0
    %484 = vmatmul.mubr.f32.gmra.mrb[0].mxu0 %v123
    %v485 = vpop.f32.mrb[0].mxu0
    %v486 = vadd.f32 0.0, %v485
    %v487 = vpop.f32.mrb[0].mxu0
    %488 = vmatprep.mubr.f32.mxu0 0.0
    %489 = vmatmul.mubr.f32.gmra.mrb[0].mxu0 %v124
    %v490 = vpop.f32.mrb[0].mxu0
    %v491 = vadd.f32 0.0, %v490
    %v492 = vpop.f32.mrb[0].mxu0
    %493 = vmatprep.mubr.f32.mxu0 0.0
    %494 = vmatmul.mubr.f32.gmra.mrb[0].mxu0 %v125
    %v495 = vpop.f32.mrb[0].mxu0
    %v496 = vadd.f32 0.0, %v495
    %v497 = vpop.f32.mrb[0].mxu0
    %498 = vmatprep.mubr.f32.mxu0 0.0
    %499 = vmatmul.mubr.f32.gmra.mrb[0].mxu0 %v126
    %v500 = vpop.f32.mrb[0].mxu0
    %v501 = vadd.f32 0.0, %v500
    %v502 = vpop.f32.mrb[0].mxu0
    %503 = vmatprep.mubr.f32.mxu0 0.0
    %504 = vmatmul.mubr.f32.gmra.mrb[0].mxu0 %v127
    %v505 = vpop.f32.mrb[0].mxu0
    %v506 = vadd.f32 0.0, %v505
    %v507 = vpop.f32.mrb[0].mxu0
    %508 = vmatprep.mubr.f32.mxu0 0.0
    %509 = vmatmul.mubr.f32.gmra.mrb[0].mxu0 %v128
    %v510 = vpop.f32.mrb[0].mxu0
    %v511 = vadd.f32 0.0, %v510
    %v512 = vpop.f32.mrb[0].mxu0
    %513 = vmatprep.mubr.f32.mxu0 0.0
    %514 = vmatmul.mubr.f32.gmra.mrb[0].mxu0 %v129
    %v515 = vpop.f32.mrb[0].mxu0
    %v516 = vadd.f32 0.0, %v515
    %v517 = vpop.f32.mrb[0].mxu0
    %518 = vmatprep.mubr.f32.mxu0 0.0
    %519 = vmatmul.mubr.f32.gmra.mrb[0].mxu0 %v130
    %v520 = vpop.f32.mrb[0].mxu0
    %v521 = vadd.f32 0.0, %v520
    %v522 = vpop.f32.mrb[0].mxu0
    %523 = vmatprep.mubr.f32.mxu0 0.0
    %524 = vmatmul.mubr.f32.gmra.mrb[0].mxu0 %v131
    %v525 = vpop.f32.mrb[0].mxu0
    %v526 = vadd.f32 0.0, %v525
    %v527 = vpop.f32.mrb[0].mxu0
    %528 = vdwg.mxu0
    %529 = vmatprep.subr.mxu0 0.0
    %530 = vmatpush1.msra.mxu0 %v198
    %531 = vmatprep.subr.mxu0 0.0
    %532 = vmatpush1.msra.mxu0 %v199
    %533 = vmatprep.subr.mxu0 0.0
    %534 = vmatpush1.msra.mxu0 %v200
    %535 = vmatprep.subr.mxu0 0.0
    %536 = vmatpush1.msra.mxu0 %v201
    %537 = vmatprep.subr.mxu0 0.0
    %538 = vmatpush1.msra.mxu0 %v202
    %539 = vmatprep.subr.mxu0 0.0
    %540 = vmatpush1.msra.mxu0 %v203
    %541 = vmatprep.subr.mxu0 0.0
    %542 = vmatpush1.msra.mxu0 %v204
    %543 = vmatprep.subr.mxu0 0.0
    %544 = vmatpush1.msra.mxu0 %v205
    %545 = vmatprep.subr.mxu0 0.0
    %546 = vmatpush1.msra.mxu0 %v206
    %547 = vmatprep.subr.mxu0 0.0
    %548 = vmatpush1.msra.mxu0 %v207
    %549 = vmatprep.subr.mxu0 0.0
    %550 = vmatpush1.msra.mxu0 %v208
    %551 = vmatprep.subr.mxu0 0.0
    %552 = vmatpush1.msra.mxu0 %v209
    %553 = vmatprep.subr.mxu0 0.0
    %554 = vmatpush1.msra.mxu0 %v210
    %555 = vmatprep.subr.mxu0 0.0
    %556 = vmatpush1.msra.mxu0 %v211
    %557 = vmatprep.subr.mxu0 0.0
    %558 = vmatpush1.msra.mxu0 %v212
    %559 = vmatprep.subr.mxu0 0.0
    %560 = vmatpush1.msra.mxu0 %v213
    %561 = vmatprep.subr.mxu0 0.0
    %562 = vmatpush1.msra.mxu0 0.0
    %563 = vmatprep.subr.mxu0 0.0
    %564 = vmatpush1.msra.mxu0 0.0
    %565 = vmatprep.subr.mxu0 0.0
    %566 = vmatpush1.msra.mxu0 0.0
    %567 = vmatprep.subr.mxu0 0.0
    %568 = vmatpush1.msra.mxu0 0.0
    %569 = vmatprep.subr.mxu0 0.0
    %570 = vmatpush1.msra.mxu0 0.0
    %571 = vmatprep.subr.mxu0 0.0
    %572 = vmatpush1.msra.mxu0 0.0
    %573 = vmatprep.subr.mxu0 0.0
    %574 = vmatpush1.msra.mxu0 0.0
    %575 = vmatprep.subr.mxu0 0.0
    %576 = vmatpush1.msra.mxu0 0.0
    %577 = vmatprep.subr.mxu0 0.0
    %578 = vmatpush1.msra.mxu0 0.0
    %579 = vmatprep.subr.mxu0 0.0
    %580 = vmatpush1.msra.mxu0 0.0
    %581 = vmatprep.subr.mxu0 0.0
    %582 = vmatpush1.msra.mxu0 0.0
    %583 = vmatprep.subr.mxu0 0.0
    %584 = vmatpush1.msra.mxu0 0.0
    %585 = vmatprep.subr.mxu0 0.0
    %586 = vmatpush1.msra.mxu0 0.0
    %587 = vmatprep.subr.mxu0 0.0
    %588 = vmatpush1.msra.mxu0 0.0
    %589 = vmatprep.subr.mxu0 0.0
    %590 = vmatpush1.msra.mxu0 0.0
    %591 = vmatprep.subr.mxu0 0.0
    %592 = vmatpush1.msra.mxu0 0.0
    %593 = vmatprep.mubr.f32.mxu0 0.0
    %594 = vmatmul.mubr.f32.gmra.mrb[0].mxu0 %v132
    %v595 = vpop.f32.mrb[0].mxu0
    %v596 = vadd.f32 0.0, %v595
    %v597 = vpop.f32.mrb[0].mxu0
    %598 = vmatprep.mubr.f32.mxu0 0.0
    %599 = vmatmul.mubr.f32.gmra.mrb[0].mxu0 %v133
    %v600 = vpop.f32.mrb[0].mxu0
    %v601 = vadd.f32 0.0, %v600
    %v602 = vpop.f32.mrb[0].mxu0
    %603 = vmatprep.mubr.f32.mxu0 0.0
    %604 = vmatmul.mubr.f32.gmra.mrb[0].mxu0 %v134
    %v605 = vpop.f32.mrb[0].mxu0
    %v606 = vadd.f32 0.0, %v605
    %v607 = vpop.f32.mrb[0].mxu0
    %608 = vmatprep.mubr.f32.mxu0 0.0
    %609 = vmatmul.mubr.f32.gmra.mrb[0].mxu0 %v135
    %v610 = vpop.f32.mrb[0].mxu0
    %v611 = vadd.f32 0.0, %v610
    %v612 = vpop.f32.mrb[0].mxu0
    %613 = vmatprep.mubr.f32.mxu0 0.0
    %614 = vmatmul.mubr.f32.gmra.mrb[0].mxu0 %v136
    %v615 = vpop.f32.mrb[0].mxu0
    %v616 = vadd.f32 0.0, %v615
    %v617 = vpop.f32.mrb[0].mxu0
    %618 = vmatprep.mubr.f32.mxu0 0.0
    %619 = vmatmul.mubr.f32.gmra.mrb[0].mxu0 %v137
    %v620 = vpop.f32.mrb[0].mxu0
    %v621 = vadd.f32 0.0, %v620
    %v622 = vpop.f32.mrb[0].mxu0
    %623 = vmatprep.mubr.f32.mxu0 0.0
    %624 = vmatmul.mubr.f32.gmra.mrb[0].mxu0 %v138
    %v625 = vpop.f32.mrb[0].mxu0
    %v626 = vadd.f32 0.0, %v625
    %v627 = vpop.f32.mrb[0].mxu0
    %628 = vmatprep.mubr.f32.mxu0 0.0
    %629 = vmatmul.mubr.f32.gmra.mrb[0].mxu0 %v139
    %v630 = vpop.f32.mrb[0].mxu0
    %v631 = vadd.f32 0.0, %v630
    %v632 = vpop.f32.mrb[0].mxu0
    %633 = vmatprep.mubr.f32.mxu0 0.0
    %634 = vmatmul.mubr.f32.gmra.mrb[0].mxu0 %v140
    %v635 = vpop.f32.mrb[0].mxu0
    %v636 = vadd.f32 0.0, %v635
    %v637 = vpop.f32.mrb[0].mxu0
    %638 = vmatprep.mubr.f32.mxu0 0.0
    %639 = vmatmul.mubr.f32.gmra.mrb[0].mxu0 %v141
    %v640 = vpop.f32.mrb[0].mxu0
    %v641 = vadd.f32 0.0, %v640
    %v642 = vpop.f32.mrb[0].mxu0
    %643 = vmatprep.mubr.f32.mxu0 0.0
    %644 = vmatmul.mubr.f32.gmra.mrb[0].mxu0 %v142
    %v645 = vpop.f32.mrb[0].mxu0
    %v646 = vadd.f32 0.0, %v645
    %v647 = vpop.f32.mrb[0].mxu0
    %648 = vmatprep.mubr.f32.mxu0 0.0
    %649 = vmatmul.mubr.f32.gmra.mrb[0].mxu0 %v143
    %v650 = vpop.f32.mrb[0].mxu0
    %v651 = vadd.f32 0.0, %v650
    %v652 = vpop.f32.mrb[0].mxu0
    %653 = vmatprep.mubr.f32.mxu0 0.0
    %654 = vmatmul.mubr.f32.gmra.mrb[0].mxu0 %v144
    %v655 = vpop.f32.mrb[0].mxu0
    %v656 = vadd.f32 0.0, %v655
    %v657 = vpop.f32.mrb[0].mxu0
    %658 = vmatprep.mubr.f32.mxu0 0.0
    %659 = vmatmul.mubr.f32.gmra.mrb[0].mxu0 %v145
    %v660 = vpop.f32.mrb[0].mxu0
    %v661 = vadd.f32 0.0, %v660
    %v662 = vpop.f32.mrb[0].mxu0
    %663 = vmatprep.mubr.f32.mxu0 0.0
    %664 = vmatmul.mubr.f32.gmra.mrb[0].mxu0 %v146
    %v665 = vpop.f32.mrb[0].mxu0
    %v666 = vadd.f32 0.0, %v665
    %v667 = vpop.f32.mrb[0].mxu0
    %668 = vmatprep.mubr.f32.mxu0 0.0
    %669 = vmatmul.mubr.f32.gmra.mrb[0].mxu0 %v147
    %v670 = vpop.f32.mrb[0].mxu0
    %v671 = vadd.f32 0.0, %v670
    %v672 = vpop.f32.mrb[0].mxu0
    %673 = vmatprep.mubr.f32.mxu0 0.0
    %674 = vmatmul.mubr.f32.gmra.mrb[0].mxu0 %v148
    %v675 = vpop.f32.mrb[0].mxu0
    %v676 = vadd.f32 0.0, %v675
    %v677 = vpop.f32.mrb[0].mxu0
    %678 = vmatprep.mubr.f32.mxu0 0.0
    %679 = vmatmul.mubr.f32.gmra.mrb[0].mxu0 %v149
    %v680 = vpop.f32.mrb[0].mxu0
    %v681 = vadd.f32 0.0, %v680
    %v682 = vpop.f32.mrb[0].mxu0
    %683 = vmatprep.mubr.f32.mxu0 0.0
    %684 = vmatmul.mubr.f32.gmra.mrb[0].mxu0 %v150
    %v685 = vpop.f32.mrb[0].mxu0
    %v686 = vadd.f32 0.0, %v685
    %v687 = vpop.f32.mrb[0].mxu0
    %688 = vmatprep.mubr.f32.mxu0 0.0
    %689 = vmatmul.mubr.f32.gmra.mrb[0].mxu0 %v151
    %v690 = vpop.f32.mrb[0].mxu0
    %v691 = vadd.f32 0.0, %v690
    %v692 = vpop.f32.mrb[0].mxu0
    %693 = vmatprep.mubr.f32.mxu0 0.0
    %694 = vmatmul.mubr.f32.gmra.mrb[0].mxu0 %v152
    %v695 = vpop.f32.mrb[0].mxu0
    %v696 = vadd.f32 0.0, %v695
    %v697 = vpop.f32.mrb[0].mxu0
    %698 = vmatprep.mubr.f32.mxu0 0.0
    %699 = vmatmul.mubr.f32.gmra.mrb[0].mxu0 %v153
    %v700 = vpop.f32.mrb[0].mxu0
    %v701 = vadd.f32 0.0, %v700
    %v702 = vpop.f32.mrb[0].mxu0
    %703 = vmatprep.mubr.f32.mxu0 0.0
    %704 = vmatmul.mubr.f32.gmra.mrb[0].mxu0 %v154
    %v705 = vpop.f32.mrb[0].mxu0
    %v706 = vadd.f32 0.0, %v705
    %v707 = vpop.f32.mrb[0].mxu0
    %708 = vmatprep.mubr.f32.mxu0 0.0
    %709 = vmatmul.mubr.f32.gmra.mrb[0].mxu0 %v155
    %v710 = vpop.f32.mrb[0].mxu0
    %v711 = vadd.f32 0.0, %v710
    %v712 = vpop.f32.mrb[0].mxu0
    %713 = vmatprep.mubr.f32.mxu0 0.0
    %714 = vmatmul.mubr.f32.gmra.mrb[0].mxu0 %v156
    %v715 = vpop.f32.mrb[0].mxu0
    %v716 = vadd.f32 0.0, %v715
    %v717 = vpop.f32.mrb[0].mxu0
    %718 = vmatprep.mubr.f32.mxu0 0.0
    %719 = vmatmul.mubr.f32.gmra.mrb[0].mxu0 %v157
    %v720 = vpop.f32.mrb[0].mxu0
    %v721 = vadd.f32 0.0, %v720
    %v722 = vpop.f32.mrb[0].mxu0
    %723 = vmatprep.mubr.f32.mxu0 0.0
    %724 = vmatmul.mubr.f32.gmra.mrb[0].mxu0 %v158
    %v725 = vpop.f32.mrb[0].mxu0
    %v726 = vadd.f32 0.0, %v725
    %v727 = vpop.f32.mrb[0].mxu0
    %728 = vmatprep.mubr.f32.mxu0 0.0
    %729 = vmatmul.mubr.f32.gmra.mrb[0].mxu0 %v159
    %v730 = vpop.f32.mrb[0].mxu0
    %v731 = vadd.f32 0.0, %v730
    %v732 = vpop.f32.mrb[0].mxu0
    %733 = vmatprep.mubr.f32.mxu0 0.0
    %734 = vmatmul.mubr.f32.gmra.mrb[0].mxu0 %v160
    %v735 = vpop.f32.mrb[0].mxu0
    %v736 = vadd.f32 0.0, %v735
    %v737 = vpop.f32.mrb[0].mxu0
    %738 = vmatprep.mubr.f32.mxu0 0.0
    %739 = vmatmul.mubr.f32.gmra.mrb[0].mxu0 %v161
    %v740 = vpop.f32.mrb[0].mxu0
    %v741 = vadd.f32 0.0, %v740
    %v742 = vpop.f32.mrb[0].mxu0
    %743 = vmatprep.mubr.f32.mxu0 0.0
    %744 = vmatmul.mubr.f32.gmra.mrb[0].mxu0 %v162
    %v745 = vpop.f32.mrb[0].mxu0
    %v746 = vadd.f32 0.0, %v745
    %v747 = vpop.f32.mrb[0].mxu0
    %748 = vmatprep.mubr.f32.mxu0 0.0
    %749 = vmatmul.mubr.f32.gmra.mrb[0].mxu0 %v163
    %v750 = vpop.f32.mrb[0].mxu0
    %v751 = vadd.f32 0.0, %v750
    %v752 = vpop.f32.mrb[0].mxu0
    %753 = vmatprep.mubr.f32.mxu0 0.0
    %754 = vmatmul.mubr.f32.gmra.mrb[0].mxu0 %v164
    %v755 = vpop.f32.mrb[0].mxu0
    %v756 = vadd.f32 0.0, %v755
    %v757 = vpop.f32.mrb[0].mxu0
    %758 = vmatprep.mubr.f32.mxu0 0.0
    %759 = vmatmul.mubr.f32.gmra.mrb[0].mxu0 %v165
    %v760 = vpop.f32.mrb[0].mxu0
    %v761 = vadd.f32 0.0, %v760
    %v762 = vpop.f32.mrb[0].mxu0
    %763 = vmatprep.mubr.f32.mxu0 0.0
    %764 = vmatmul.mubr.f32.gmra.mrb[0].mxu0 %v166
    %v765 = vpop.f32.mrb[0].mxu0
    %v766 = vadd.f32 0.0, %v765
    %v767 = vpop.f32.mrb[0].mxu0
    %768 = vmatprep.mubr.f32.mxu0 0.0
    %769 = vmatmul.mubr.f32.gmra.mrb[0].mxu0 %v167
    %v770 = vpop.f32.mrb[0].mxu0
    %v771 = vadd.f32 0.0, %v770
    %v772 = vpop.f32.mrb[0].mxu0
    %773 = vmatprep.mubr.f32.mxu0 0.0
    %774 = vmatmul.mubr.f32.gmra.mrb[0].mxu0 %v168
    %v775 = vpop.f32.mrb[0].mxu0
    %v776 = vadd.f32 0.0, %v775
    %v777 = vpop.f32.mrb[0].mxu0
    %778 = vmatprep.mubr.f32.mxu0 0.0
    %779 = vmatmul.mubr.f32.gmra.mrb[0].mxu0 %v169
    %v780 = vpop.f32.mrb[0].mxu0
    %v781 = vadd.f32 0.0, %v780
    %v782 = vpop.f32.mrb[0].mxu0
    %783 = vmatprep.mubr.f32.mxu0 0.0
    %784 = vmatmul.mubr.f32.gmra.mrb[0].mxu0 %v170
    %v785 = vpop.f32.mrb[0].mxu0
    %v786 = vadd.f32 0.0, %v785
    %v787 = vpop.f32.mrb[0].mxu0
    %788 = vmatprep.mubr.f32.mxu0 0.0
    %789 = vmatmul.mubr.f32.gmra.mrb[0].mxu0 %v171
    %v790 = vpop.f32.mrb[0].mxu0
    %v791 = vadd.f32 0.0, %v790
    %v792 = vpop.f32.mrb[0].mxu0
    %793 = vmatprep.mubr.f32.mxu0 0.0
    %794 = vmatmul.mubr.f32.gmra.mrb[0].mxu0 %v172
    %v795 = vpop.f32.mrb[0].mxu0
    %v796 = vadd.f32 0.0, %v795
    %v797 = vpop.f32.mrb[0].mxu0
    %798 = vmatprep.mubr.f32.mxu0 0.0
    %799 = vmatmul.mubr.f32.gmra.mrb[0].mxu0 %v173
    %v800 = vpop.f32.mrb[0].mxu0
    %v801 = vadd.f32 0.0, %v800
    %v802 = vpop.f32.mrb[0].mxu0
    %803 = vmatprep.mubr.f32.mxu0 0.0
    %804 = vmatmul.mubr.f32.gmra.mrb[0].mxu0 %v174
    %v805 = vpop.f32.mrb[0].mxu0
    %v806 = vadd.f32 0.0, %v805
    %v807 = vpop.f32.mrb[0].mxu0
    %808 = vmatprep.mubr.f32.mxu0 0.0
    %809 = vmatmul.mubr.f32.gmra.mrb[0].mxu0 %v175
    %v810 = vpop.f32.mrb[0].mxu0
    %v811 = vadd.f32 0.0, %v810
    %v812 = vpop.f32.mrb[0].mxu0
    %813 = vmatprep.mubr.f32.mxu0 0.0
    %814 = vmatmul.mubr.f32.gmra.mrb[0].mxu0 %v176
    %v815 = vpop.f32.mrb[0].mxu0
    %v816 = vadd.f32 0.0, %v815
    %v817 = vpop.f32.mrb[0].mxu0
    %818 = vmatprep.mubr.f32.mxu0 0.0
    %819 = vmatmul.mubr.f32.gmra.mrb[0].mxu0 %v177
    %v820 = vpop.f32.mrb[0].mxu0
    %v821 = vadd.f32 0.0, %v820
    %v822 = vpop.f32.mrb[0].mxu0
    %823 = vmatprep.mubr.f32.mxu0 0.0
    %824 = vmatmul.mubr.f32.gmra.mrb[0].mxu0 %v178
    %v825 = vpop.f32.mrb[0].mxu0
    %v826 = vadd.f32 0.0, %v825
    %v827 = vpop.f32.mrb[0].mxu0
    %828 = vmatprep.mubr.f32.mxu0 0.0
    %829 = vmatmul.mubr.f32.gmra.mrb[0].mxu0 %v179
    %v830 = vpop.f32.mrb[0].mxu0
    %v831 = vadd.f32 0.0, %v830
    %v832 = vpop.f32.mrb[0].mxu0
    %833 = vmatprep.mubr.f32.mxu0 0.0
    %834 = vmatmul.mubr.f32.gmra.mrb[0].mxu0 %v180
    %v835 = vpop.f32.mrb[0].mxu0
    %v836 = vadd.f32 0.0, %v835
    %v837 = vpop.f32.mrb[0].mxu0
    %838 = vmatprep.mubr.f32.mxu0 0.0
    %839 = vmatmul.mubr.f32.gmra.mrb[0].mxu0 %v181
    %v840 = vpop.f32.mrb[0].mxu0
    %v841 = vadd.f32 0.0, %v840
    %v842 = vpop.f32.mrb[0].mxu0
    %843 = vdwg.mxu0
    %844 = vmatprep.subr.mxu0 0.0
    %845 = vmatpush1.msra.mxu0 %v182
    %846 = vmatprep.subr.mxu0 0.0
    %847 = vmatpush1.msra.mxu0 %v183
    %848 = vmatprep.subr.mxu0 0.0
    %849 = vmatpush1.msra.mxu0 %v184
    %850 = vmatprep.subr.mxu0 0.0
    %851 = vmatpush1.msra.mxu0 %v185
    %852 = vmatprep.subr.mxu0 0.0
    %853 = vmatpush1.msra.mxu0 %v186
    %854 = vmatprep.subr.mxu0 0.0
    %855 = vmatpush1.msra.mxu0 %v187
    %856 = vmatprep.subr.mxu0 0.0
    %857 = vmatpush1.msra.mxu0 %v188
    %858 = vmatprep.subr.mxu0 0.0
    %859 = vmatpush1.msra.mxu0 %v189
    %860 = vmatprep.subr.mxu0 0.0
    %861 = vmatpush1.msra.mxu0 %v190
    %862 = vmatprep.subr.mxu0 0.0
    %863 = vmatpush1.msra.mxu0 %v191
    %864 = vmatprep.subr.mxu0 0.0
    %865 = vmatpush1.msra.mxu0 %v192
    %866 = vmatprep.subr.mxu0 0.0
    %867 = vmatpush1.msra.mxu0 %v193
    %868 = vmatprep.subr.mxu0 0.0
    %869 = vmatpush1.msra.mxu0 %v194
    %870 = vmatprep.subr.mxu0 0.0
    %871 = vmatpush1.msra.mxu0 %v195
    %872 = vmatprep.subr.mxu0 0.0
    %873 = vmatpush1.msra.mxu0 %v196
    %874 = vmatprep.subr.mxu0 0.0
    %875 = vmatpush1.msra.mxu0 %v197
    %876 = vmatprep.subr.mxu0 0.0
    %877 = vmatpush1.msra.mxu0 0.0
    %878 = vmatprep.subr.mxu0 0.0
    %879 = vmatpush1.msra.mxu0 0.0
    %880 = vmatprep.subr.mxu0 0.0
    %881 = vmatpush1.msra.mxu0 0.0
    %882 = vmatprep.subr.mxu0 0.0
    %883 = vmatpush1.msra.mxu0 0.0
    %884 = vmatprep.subr.mxu0 0.0
    %885 = vmatpush1.msra.mxu0 0.0
    %886 = vmatprep.subr.mxu0 0.0
    %887 = vmatpush1.msra.mxu0 0.0
    %888 = vmatprep.subr.mxu0 0.0
    %889 = vmatpush1.msra.mxu0 0.0
    %890 = vmatprep.subr.mxu0 0.0
    %891 = vmatpush1.msra.mxu0 0.0
    %892 = vmatprep.subr.mxu0 0.0
    %893 = vmatpush1.msra.mxu0 0.0
    %894 = vmatprep.subr.mxu0 0.0
    %895 = vmatpush1.msra.mxu0 0.0
    %896 = vmatprep.subr.mxu0 0.0
    %897 = vmatpush1.msra.mxu0 0.0
    %898 = vmatprep.subr.mxu0 0.0
    %899 = vmatpush1.msra.mxu0 0.0
    %900 = vmatprep.subr.mxu0 0.0
    %901 = vmatpush1.msra.mxu0 0.0
    %902 = vmatprep.subr.mxu0 0.0
    %903 = vmatpush1.msra.mxu0 0.0
    %904 = vmatprep.subr.mxu0 0.0
    %905 = vmatpush1.msra.mxu0 0.0
    %906 = vmatprep.subr.mxu0 0.0
    %907 = vmatpush1.msra.mxu0 0.0
    %908 = vmatprep.mubr.f32.mxu0 0.0
    %909 = vmatmul.mubr.f32.gmra.mrb[0].mxu0 %v132
    %v910 = vpop.f32.mrb[0].mxu0
    %v911 = vadd.f32 0.0, %v910
    %v912 = vpop.f32.mrb[0].mxu0
    %913 = vmatprep.mubr.f32.mxu0 0.0
    %914 = vmatmul.mubr.f32.gmra.mrb[0].mxu0 %v133
    %v915 = vpop.f32.mrb[0].mxu0
    %v916 = vadd.f32 0.0, %v915
    %v917 = vpop.f32.mrb[0].mxu0
    %918 = vmatprep.mubr.f32.mxu0 0.0
    %919 = vmatmul.mubr.f32.gmra.mrb[0].mxu0 %v134
    %v920 = vpop.f32.mrb[0].mxu0
    %v921 = vadd.f32 0.0, %v920
    %v922 = vpop.f32.mrb[0].mxu0
    %923 = vmatprep.mubr.f32.mxu0 0.0
    %924 = vmatmul.mubr.f32.gmra.mrb[0].mxu0 %v135
    %v925 = vpop.f32.mrb[0].mxu0
    %v926 = vadd.f32 0.0, %v925
    %v927 = vpop.f32.mrb[0].mxu0
    %928 = vmatprep.mubr.f32.mxu0 0.0
    %929 = vmatmul.mubr.f32.gmra.mrb[0].mxu0 %v136
    %v930 = vpop.f32.mrb[0].mxu0
    %v931 = vadd.f32 0.0, %v930
    %v932 = vpop.f32.mrb[0].mxu0
    %933 = vmatprep.mubr.f32.mxu0 0.0
    %934 = vmatmul.mubr.f32.gmra.mrb[0].mxu0 %v137
    %v935 = vpop.f32.mrb[0].mxu0
    %v936 = vadd.f32 0.0, %v935
    %v937 = vpop.f32.mrb[0].mxu0
    %938 = vmatprep.mubr.f32.mxu0 0.0
    %939 = vmatmul.mubr.f32.gmra.mrb[0].mxu0 %v138
    %v940 = vpop.f32.mrb[0].mxu0
    %v941 = vadd.f32 0.0, %v940
    %v942 = vpop.f32.mrb[0].mxu0
    %943 = vmatprep.mubr.f32.mxu0 0.0
    %944 = vmatmul.mubr.f32.gmra.mrb[0].mxu0 %v139
    %v945 = vpop.f32.mrb[0].mxu0
    %v946 = vadd.f32 0.0, %v945
    %v947 = vpop.f32.mrb[0].mxu0
    %948 = vmatprep.mubr.f32.mxu0 0.0
    %949 = vmatmul.mubr.f32.gmra.mrb[0].mxu0 %v140
    %v950 = vpop.f32.mrb[0].mxu0
    %v951 = vadd.f32 0.0, %v950
    %v952 = vpop.f32.mrb[0].mxu0
    %953 = vmatprep.mubr.f32.mxu0 0.0
    %954 = vmatmul.mubr.f32.gmra.mrb[0].mxu0 %v141
    %v955 = vpop.f32.mrb[0].mxu0
    %v956 = vadd.f32 0.0, %v955
    %v957 = vpop.f32.mrb[0].mxu0
    %958 = vmatprep.mubr.f32.mxu0 0.0
    %959 = vmatmul.mubr.f32.gmra.mrb[0].mxu0 %v142
    %v960 = vpop.f32.mrb[0].mxu0
    %v961 = vadd.f32 0.0, %v960
    %v962 = vpop.f32.mrb[0].mxu0
    %963 = vmatprep.mubr.f32.mxu0 0.0
    %964 = vmatmul.mubr.f32.gmra.mrb[0].mxu0 %v143
    %v965 = vpop.f32.mrb[0].mxu0
    %v966 = vadd.f32 0.0, %v965
    %v967 = vpop.f32.mrb[0].mxu0
    %968 = vmatprep.mubr.f32.mxu0 0.0
    %969 = vmatmul.mubr.f32.gmra.mrb[0].mxu0 %v144
    %v970 = vpop.f32.mrb[0].mxu0
    %v971 = vadd.f32 0.0, %v970
    %v972 = vpop.f32.mrb[0].mxu0
    %973 = vmatprep.mubr.f32.mxu0 0.0
    %974 = vmatmul.mubr.f32.gmra.mrb[0].mxu0 %v145
    %v975 = vpop.f32.mrb[0].mxu0
    %v976 = vadd.f32 0.0, %v975
    %v977 = vpop.f32.mrb[0].mxu0
    %978 = vmatprep.mubr.f32.mxu0 0.0
    %979 = vmatmul.mubr.f32.gmra.mrb[0].mxu0 %v146
    %v980 = vpop.f32.mrb[0].mxu0
    %v981 = vadd.f32 0.0, %v980
    %v982 = vpop.f32.mrb[0].mxu0
    %983 = vmatprep.mubr.f32.mxu0 0.0
    %984 = vmatmul.mubr.f32.gmra.mrb[0].mxu0 %v147
    %v985 = vpop.f32.mrb[0].mxu0
    %v986 = vadd.f32 0.0, %v985
    %v987 = vpop.f32.mrb[0].mxu0
    %988 = vmatprep.mubr.f32.mxu0 0.0
    %989 = vmatmul.mubr.f32.gmra.mrb[0].mxu0 %v148
    %v990 = vpop.f32.mrb[0].mxu0
    %v991 = vadd.f32 0.0, %v990
    %v992 = vpop.f32.mrb[0].mxu0
    %993 = vmatprep.mubr.f32.mxu0 0.0
    %994 = vmatmul.mubr.f32.gmra.mrb[0].mxu0 %v149
    %v995 = vpop.f32.mrb[0].mxu0
    %v996 = vadd.f32 0.0, %v995
    %v997 = vpop.f32.mrb[0].mxu0
    %998 = vmatprep.mubr.f32.mxu0 0.0
    %999 = vmatmul.mubr.f32.gmra.mrb[0].mxu0 %v150
    %v1000 = vpop.f32.mrb[0].mxu0
    %v1001 = vadd.f32 0.0, %v1000
    %v1002 = vpop.f32.mrb[0].mxu0
    %1003 = vmatprep.mubr.f32.mxu0 0.0
    %1004 = vmatmul.mubr.f32.gmra.mrb[0].mxu0 %v151
    %v1005 = vpop.f32.mrb[0].mxu0
    %v1006 = vadd.f32 0.0, %v1005
    %v1007 = vpop.f32.mrb[0].mxu0
    %1008 = vmatprep.mubr.f32.mxu0 0.0
    %1009 = vmatmul.mubr.f32.gmra.mrb[0].mxu0 %v152
    %v1010 = vpop.f32.mrb[0].mxu0
    %v1011 = vadd.f32 0.0, %v1010
    %v1012 = vpop.f32.mrb[0].mxu0
    %1013 = vmatprep.mubr.f32.mxu0 0.0
    %1014 = vmatmul.mubr.f32.gmra.mrb[0].mxu0 %v153
    %v1015 = vpop.f32.mrb[0].mxu0
    %v1016 = vadd.f32 0.0, %v1015
    %v1017 = vpop.f32.mrb[0].mxu0
    %1018 = vmatprep.mubr.f32.mxu0 0.0
    %1019 = vmatmul.mubr.f32.gmra.mrb[0].mxu0 %v154
    %v1020 = vpop.f32.mrb[0].mxu0
    %v1021 = vadd.f32 0.0, %v1020
    %v1022 = vpop.f32.mrb[0].mxu0
    %1023 = vmatprep.mubr.f32.mxu0 0.0
    %1024 = vmatmul.mubr.f32.gmra.mrb[0].mxu0 %v155
    %v1025 = vpop.f32.mrb[0].mxu0
    %v1026 = vadd.f32 0.0, %v1025
    %v1027 = vpop.f32.mrb[0].mxu0
    %1028 = vmatprep.mubr.f32.mxu0 0.0
    %1029 = vmatmul.mubr.f32.gmra.mrb[0].mxu0 %v156
    %v1030 = vpop.f32.mrb[0].mxu0
    %v1031 = vadd.f32 0.0, %v1030
    %v1032 = vpop.f32.mrb[0].mxu0
    %1033 = vmatprep.mubr.f32.mxu0 0.0
    %1034 = vmatmul.mubr.f32.gmra.mrb[0].mxu0 %v157
    %v1035 = vpop.f32.mrb[0].mxu0
    %v1036 = vadd.f32 0.0, %v1035
    %v1037 = vpop.f32.mrb[0].mxu0
    %1038 = vmatprep.mubr.f32.mxu0 0.0
    %1039 = vmatmul.mubr.f32.gmra.mrb[0].mxu0 %v158
    %v1040 = vpop.f32.mrb[0].mxu0
    %v1041 = vadd.f32 0.0, %v1040
    %v1042 = vpop.f32.mrb[0].mxu0
    %1043 = vmatprep.mubr.f32.mxu0 0.0
    %1044 = vmatmul.mubr.f32.gmra.mrb[0].mxu0 %v159
    %v1045 = vpop.f32.mrb[0].mxu0
    %v1046 = vadd.f32 0.0, %v1045
    %v1047 = vpop.f32.mrb[0].mxu0
    %1048 = vmatprep.mubr.f32.mxu0 0.0
    %1049 = vmatmul.mubr.f32.gmra.mrb[0].mxu0 %v160
    %v1050 = vpop.f32.mrb[0].mxu0
    %v1051 = vadd.f32 0.0, %v1050
    %v1052 = vpop.f32.mrb[0].mxu0
    %1053 = vmatprep.mubr.f32.mxu0 0.0
    %1054 = vmatmul.mubr.f32.gmra.mrb[0].mxu0 %v161
    %v1055 = vpop.f32.mrb[0].mxu0
    %v1056 = vadd.f32 0.0, %v1055
    %v1057 = vpop.f32.mrb[0].mxu0
    %1058 = vmatprep.mubr.f32.mxu0 0.0
    %1059 = vmatmul.mubr.f32.gmra.mrb[0].mxu0 %v162
    %v1060 = vpop.f32.mrb[0].mxu0
    %v1061 = vadd.f32 0.0, %v1060
    %v1062 = vpop.f32.mrb[0].mxu0
    %1063 = vmatprep.mubr.f32.mxu0 0.0
    %1064 = vmatmul.mubr.f32.gmra.mrb[0].mxu0 %v163
    %v1065 = vpop.f32.mrb[0].mxu0
    %v1066 = vadd.f32 0.0, %v1065
    %v1067 = vpop.f32.mrb[0].mxu0
    %1068 = vmatprep.mubr.f32.mxu0 0.0
    %1069 = vmatmul.mubr.f32.gmra.mrb[0].mxu0 %v164
    %v1070 = vpop.f32.mrb[0].mxu0
    %v1071 = vadd.f32 0.0, %v1070
    %v1072 = vpop.f32.mrb[0].mxu0
    %1073 = vmatprep.mubr.f32.mxu0 0.0
    %1074 = vmatmul.mubr.f32.gmra.mrb[0].mxu0 %v165
    %v1075 = vpop.f32.mrb[0].mxu0
    %v1076 = vadd.f32 0.0, %v1075
    %v1077 = vpop.f32.mrb[0].mxu0
    %1078 = vmatprep.mubr.f32.mxu0 0.0
    %1079 = vmatmul.mubr.f32.gmra.mrb[0].mxu0 %v166
    %v1080 = vpop.f32.mrb[0].mxu0
    %v1081 = vadd.f32 0.0, %v1080
    %v1082 = vpop.f32.mrb[0].mxu0
    %1083 = vmatprep.mubr.f32.mxu0 0.0
    %1084 = vmatmul.mubr.f32.gmra.mrb[0].mxu0 %v167
    %v1085 = vpop.f32.mrb[0].mxu0
    %v1086 = vadd.f32 0.0, %v1085
    %v1087 = vpop.f32.mrb[0].mxu0
    %1088 = vmatprep.mubr.f32.mxu0 0.0
    %1089 = vmatmul.mubr.f32.gmra.mrb[0].mxu0 %v168
    %v1090 = vpop.f32.mrb[0].mxu0
    %v1091 = vadd.f32 0.0, %v1090
    %v1092 = vpop.f32.mrb[0].mxu0
    %1093 = vmatprep.mubr.f32.mxu0 0.0
    %1094 = vmatmul.mubr.f32.gmra.mrb[0].mxu0 %v169
    %v1095 = vpop.f32.mrb[0].mxu0
    %v1096 = vadd.f32 0.0, %v1095
    %v1097 = vpop.f32.mrb[0].mxu0
    %1098 = vmatprep.mubr.f32.mxu0 0.0
    %1099 = vmatmul.mubr.f32.gmra.mrb[0].mxu0 %v170
    %v1100 = vpop.f32.mrb[0].mxu0
    %v1101 = vadd.f32 0.0, %v1100
    %v1102 = vpop.f32.mrb[0].mxu0
    %1103 = vmatprep.mubr.f32.mxu0 0.0
    %1104 = vmatmul.mubr.f32.gmra.mrb[0].mxu0 %v171
    %v1105 = vpop.f32.mrb[0].mxu0
    %v1106 = vadd.f32 0.0, %v1105
    %v1107 = vpop.f32.mrb[0].mxu0
    %1108 = vmatprep.mubr.f32.mxu0 0.0
    %1109 = vmatmul.mubr.f32.gmra.mrb[0].mxu0 %v172
    %v1110 = vpop.f32.mrb[0].mxu0
    %v1111 = vadd.f32 0.0, %v1110
    %v1112 = vpop.f32.mrb[0].mxu0
    %1113 = vmatprep.mubr.f32.mxu0 0.0
    %1114 = vmatmul.mubr.f32.gmra.mrb[0].mxu0 %v173
    %v1115 = vpop.f32.mrb[0].mxu0
    %v1116 = vadd.f32 0.0, %v1115
    %v1117 = vpop.f32.mrb[0].mxu0
    %1118 = vmatprep.mubr.f32.mxu0 0.0
    %1119 = vmatmul.mubr.f32.gmra.mrb[0].mxu0 %v174
    %v1120 = vpop.f32.mrb[0].mxu0
    %v1121 = vadd.f32 0.0, %v1120
    %v1122 = vpop.f32.mrb[0].mxu0
    %1123 = vmatprep.mubr.f32.mxu0 0.0
    %1124 = vmatmul.mubr.f32.gmra.mrb[0].mxu0 %v175
    %v1125 = vpop.f32.mrb[0].mxu0
    %v1126 = vadd.f32 0.0, %v1125
    %v1127 = vpop.f32.mrb[0].mxu0
    %1128 = vmatprep.mubr.f32.mxu0 0.0
    %1129 = vmatmul.mubr.f32.gmra.mrb[0].mxu0 %v176
    %v1130 = vpop.f32.mrb[0].mxu0
    %v1131 = vadd.f32 0.0, %v1130
    %v1132 = vpop.f32.mrb[0].mxu0
    %1133 = vmatprep.mubr.f32.mxu0 0.0
    %1134 = vmatmul.mubr.f32.gmra.mrb[0].mxu0 %v177
    %v1135 = vpop.f32.mrb[0].mxu0
    %v1136 = vadd.f32 0.0, %v1135
    %v1137 = vpop.f32.mrb[0].mxu0
    %1138 = vmatprep.mubr.f32.mxu0 0.0
    %1139 = vmatmul.mubr.f32.gmra.mrb[0].mxu0 %v178
    %v1140 = vpop.f32.mrb[0].mxu0
    %v1141 = vadd.f32 0.0, %v1140
    %v1142 = vpop.f32.mrb[0].mxu0
    %1143 = vmatprep.mubr.f32.mxu0 0.0
    %1144 = vmatmul.mubr.f32.gmra.mrb[0].mxu0 %v179
    %v1145 = vpop.f32.mrb[0].mxu0
    %v1146 = vadd.f32 0.0, %v1145
    %v1147 = vpop.f32.mrb[0].mxu0
    %1148 = vmatprep.mubr.f32.mxu0 0.0
    %1149 = vmatmul.mubr.f32.gmra.mrb[0].mxu0 %v180
    %v1150 = vpop.f32.mrb[0].mxu0
    %v1151 = vadd.f32 0.0, %v1150
    %v1152 = vpop.f32.mrb[0].mxu0
    %1153 = vmatprep.mubr.f32.mxu0 0.0
    %1154 = vmatmul.mubr.f32.gmra.mrb[0].mxu0 %v181
    %v1155 = vpop.f32.mrb[0].mxu0
    %v1156 = vadd.f32 0.0, %v1155
    %v1157 = vpop.f32.mrb[0].mxu0
    %1158 = vdwg.mxu0
    %v1159 = vsub.f32 %v281, %v596
    %v1160 = vsub.f32 %v286, %v601
    %v1161 = vsub.f32 %v291, %v606
    %v1162 = vsub.f32 %v296, %v611
    %v1163 = vsub.f32 %v301, %v616
    %v1164 = vsub.f32 %v306, %v621
    %v1165 = vsub.f32 %v311, %v626
    %v1166 = vsub.f32 %v316, %v631
    %v1167 = vsub.f32 %v321, %v636
    %v1168 = vsub.f32 %v326, %v641
    %v1169 = vsub.f32 %v331, %v646
    %v1170 = vsub.f32 %v336, %v651
    %v1171 = vsub.f32 %v341, %v656
    %v1172 = vsub.f32 %v346, %v661
    %v1173 = vsub.f32 %v351, %v666
    %v1174 = vsub.f32 %v356, %v671
    %v1175 = vsub.f32 %v361, %v676
    %v1176 = vsub.f32 %v366, %v681
    %v1177 = vsub.f32 %v371, %v686
    %v1178 = vsub.f32 %v376, %v691
    %v1179 = vsub.f32 %v381, %v696
    %v1180 = vsub.f32 %v386, %v701
    %v1181 = vsub.f32 %v391, %v706
    %v1182 = vsub.f32 %v396, %v711
    %v1183 = vsub.f32 %v401, %v716
    %v1184 = vsub.f32 %v406, %v721
    %v1185 = vsub.f32 %v411, %v726
    %v1186 = vsub.f32 %v416, %v731
    %v1187 = vsub.f32 %v421, %v736
    %v1188 = vsub.f32 %v426, %v741
    %v1189 = vsub.f32 %v431, %v746
    %v1190 = vsub.f32 %v436, %v751
    %v1191 = vsub.f32 %v441, %v756
    %v1192 = vsub.f32 %v446, %v761
    %v1193 = vsub.f32 %v451, %v766
    %v1194 = vsub.f32 %v456, %v771
    %v1195 = vsub.f32 %v461, %v776
    %v1196 = vsub.f32 %v466, %v781
    %v1197 = vsub.f32 %v471, %v786
    %v1198 = vsub.f32 %v476, %v791
    %v1199 = vsub.f32 %v481, %v796
    %v1200 = vsub.f32 %v486, %v801
    %v1201 = vsub.f32 %v491, %v806
    %v1202 = vsub.f32 %v496, %v811
    %v1203 = vsub.f32 %v501, %v816
    %v1204 = vsub.f32 %v506, %v821
    %v1205 = vsub.f32 %v511, %v826
    %v1206 = vsub.f32 %v516, %v831
    %v1207 = vsub.f32 %v521, %v836
    %v1208 = vsub.f32 %v526, %v841
    %v1209 = vld [vmem:[%s4] sm:$0x1]
    %v1211 = vlaneseq
    %v1212 = vshrl.u32 %v1211, 7
    %v1213 = vsub.s32 0, %v1212
    %v1214 = vrot.slane %v1209, %v1213
    %v1216 = vadd.f32 %v1159, %v1214
    %v1217 = vadd.f32 %v1160, %v1214
    %v1218 = vadd.f32 %v1161, %v1214
    %v1219 = vadd.f32 %v1162, %v1214
    %v1220 = vadd.f32 %v1163, %v1214
    %v1221 = vadd.f32 %v1164, %v1214
    %v1222 = vadd.f32 %v1165, %v1214
    %v1223 = vadd.f32 %v1166, %v1214
    %v1224 = vadd.f32 %v1167, %v1214
    %v1225 = vadd.f32 %v1168, %v1214
    %v1226 = vadd.f32 %v1169, %v1214
    %v1227 = vadd.f32 %v1170, %v1214
    %v1228 = vadd.f32 %v1171, %v1214
    %v1229 = vadd.f32 %v1172, %v1214
    %v1230 = vadd.f32 %v1173, %v1214
    %v1231 = vadd.f32 %v1174, %v1214
    %v1232 = vadd.f32 %v1175, %v1214
    %v1233 = vadd.f32 %v1176, %v1214
    %v1234 = vadd.f32 %v1177, %v1214
    %v1235 = vadd.f32 %v1178, %v1214
    %v1236 = vadd.f32 %v1179, %v1214
    %v1237 = vadd.f32 %v1180, %v1214
    %v1238 = vadd.f32 %v1181, %v1214
    %v1239 = vadd.f32 %v1182, %v1214
    %v1240 = vadd.f32 %v1183, %v1214
    %v1241 = vadd.f32 %v1184, %v1214
    %v1242 = vadd.f32 %v1185, %v1214
    %v1243 = vadd.f32 %v1186, %v1214
    %v1244 = vadd.f32 %v1187, %v1214
    %v1245 = vadd.f32 %v1188, %v1214
    %v1246 = vadd.f32 %v1189, %v1214
    %v1247 = vadd.f32 %v1190, %v1214
    %v1248 = vadd.f32 %v1191, %v1214
    %v1249 = vadd.f32 %v1192, %v1214
    %v1250 = vadd.f32 %v1193, %v1214
    %v1251 = vadd.f32 %v1194, %v1214
    %v1252 = vadd.f32 %v1195, %v1214
    %v1253 = vadd.f32 %v1196, %v1214
    %v1254 = vadd.f32 %v1197, %v1214
    %v1255 = vadd.f32 %v1198, %v1214
    %v1256 = vadd.f32 %v1199, %v1214
    %v1257 = vadd.f32 %v1200, %v1214
    %v1258 = vadd.f32 %v1201, %v1214
    %v1259 = vadd.f32 %v1202, %v1214
    %v1260 = vadd.f32 %v1203, %v1214
    %v1261 = vadd.f32 %v1204, %v1214
    %v1262 = vadd.f32 %v1205, %v1214
    %v1263 = vadd.f32 %v1206, %v1214
    %v1264 = vadd.f32 %v1207, %v1214
    %v1265 = vadd.f32 %v1208, %v1214
    %1266 = vst [vmem:[#allocation10] sm:$0xff] %v1216
    %1267 = vst [vmem:[#allocation10 + $0x8] sm:$0xff] %v1217
    %1268 = vst [vmem:[#allocation10 + $0x10] sm:$0xff] %v1218
    %1269 = vst [vmem:[#allocation10 + $0x18] sm:$0xff] %v1219
    %1270 = vst [vmem:[#allocation10 + $0x20] sm:$0xff] %v1220
    %1271 = vst [vmem:[#allocation10 + $0x28] sm:$0xff] %v1221
    %1272 = vst [vmem:[#allocation10 + $0x30] sm:$0xff] %v1222
    %1273 = vst [vmem:[#allocation10 + $0x38] sm:$0xff] %v1223
    %1274 = vst [vmem:[#allocation10 + $0x40] sm:$0xff] %v1224
    %1275 = vst [vmem:[#allocation10 + $0x48] sm:$0xff] %v1225
    %1276 = vst [vmem:[#allocation10 + $0x50] sm:$0xff] %v1226
    %1277 = vst [vmem:[#allocation10 + $0x58] sm:$0xff] %v1227
    %1278 = vst [vmem:[#allocation10 + $0x60] sm:$0xff] %v1228
    %1279 = vst [vmem:[#allocation10 + $0x68] sm:$0xff] %v1229
    %1280 = vst [vmem:[#allocation10 + $0x70] sm:$0xff] %v1230
    %1281 = vst [vmem:[#allocation10 + $0x78] sm:$0xff] %v1231
    %1282 = vst [vmem:[#allocation10 + $0x80] sm:$0xff] %v1232
    %1283 = vst [vmem:[#allocation10 + $0x88] sm:$0xff] %v1233
    %1284 = vst [vmem:[#allocation10 + $0x90] sm:$0xff] %v1234
    %1285 = vst [vmem:[#allocation10 + $0x98] sm:$0xff] %v1235
    %1286 = vst [vmem:[#allocation10 + $0xa0] sm:$0xff] %v1236
    %1287 = vst [vmem:[#allocation10 + $0xa8] sm:$0xff] %v1237
    %1288 = vst [vmem:[#allocation10 + $0xb0] sm:$0xff] %v1238
    %1289 = vst [vmem:[#allocation10 + $0xb8] sm:$0xff] %v1239
    %1290 = vst [vmem:[#allocation10 + $0xc0] sm:$0xff] %v1240
    %1291 = vst [vmem:[#allocation10 + $0xc8] sm:$0xff] %v1241
    %1292 = vst [vmem:[#allocation10 + $0xd0] sm:$0xff] %v1242
    %1293 = vst [vmem:[#allocation10 + $0xd8] sm:$0xff] %v1243
    %1294 = vst [vmem:[#allocation10 + $0xe0] sm:$0xff] %v1244
    %1295 = vst [vmem:[#allocation10 + $0xe8] sm:$0xff] %v1245
    %1296 = vst [vmem:[#allocation10 + $0xf0] sm:$0xff] %v1246
    %1297 = vst [vmem:[#allocation10 + $0xf8] sm:$0xff] %v1247
    %1298 = vst [vmem:[#allocation10 + $0x100] sm:$0xff] %v1248
    %1299 = vst [vmem:[#allocation10 + $0x108] sm:$0xff] %v1249
    %1300 = vst [vmem:[#allocation10 + $0x110] sm:$0xff] %v1250
    %1301 = vst [vmem:[#allocation10 + $0x118] sm:$0xff] %v1251
    %1302 = vst [vmem:[#allocation10 + $0x120] sm:$0xff] %v1252
    %1303 = vst [vmem:[#allocation10 + $0x128] sm:$0xff] %v1253
    %1304 = vst [vmem:[#allocation10 + $0x130] sm:$0xff] %v1254
    %1305 = vst [vmem:[#allocation10 + $0x138] sm:$0xff] %v1255
    %1306 = vst [vmem:[#allocation10 + $0x140] sm:$0xff] %v1256
    %1307 = vst [vmem:[#allocation10 + $0x148] sm:$0xff] %v1257
    %1308 = vst [vmem:[#allocation10 + $0x150] sm:$0xff] %v1258
    %1309 = vst [vmem:[#allocation10 + $0x158] sm:$0xff] %v1259
    %1310 = vst [vmem:[#allocation10 + $0x160] sm:$0xff] %v1260
    %1311 = vst [vmem:[#allocation10 + $0x168] sm:$0xff] %v1261
    %1312 = vst [vmem:[#allocation10 + $0x170] sm:$0xff] %v1262
    %1313 = vst [vmem:[#allocation10 + $0x178] sm:$0xff] %v1263
    %1314 = vst [vmem:[#allocation10 + $0x180] sm:$0xff] %v1264
    %1315 = vst [vmem:[#allocation10 + $0x188] sm:$0xff] %v1265
    %1316 = vmatprep.subr.mxu0 0.0
    %1317 = vmatpush1.msra.mxu0 %v198
    %1318 = vmatprep.subr.mxu0 0.0
    %1319 = vmatpush1.msra.mxu0 %v199
    %1320 = vmatprep.subr.mxu0 0.0
    %1321 = vmatpush1.msra.mxu0 %v200
    %1322 = vmatprep.subr.mxu0 0.0
    %1323 = vmatpush1.msra.mxu0 %v201
    %1324 = vmatprep.subr.mxu0 0.0
    %1325 = vmatpush1.msra.mxu0 %v202
    %1326 = vmatprep.subr.mxu0 0.0
    %1327 = vmatpush1.msra.mxu0 %v203
    %1328 = vmatprep.subr.mxu0 0.0
    %1329 = vmatpush1.msra.mxu0 %v204
    %1330 = vmatprep.subr.mxu0 0.0
    %1331 = vmatpush1.msra.mxu0 %v205
    %1332 = vmatprep.subr.mxu0 0.0
    %1333 = vmatpush1.msra.mxu0 %v206
    %1334 = vmatprep.subr.mxu0 0.0
    %1335 = vmatpush1.msra.mxu0 %v207
    %1336 = vmatprep.subr.mxu0 0.0
    %1337 = vmatpush1.msra.mxu0 %v208
    %1338 = vmatprep.subr.mxu0 0.0
    %1339 = vmatpush1.msra.mxu0 %v209
    %1340 = vmatprep.subr.mxu0 0.0
    %1341 = vmatpush1.msra.mxu0 %v210
    %1342 = vmatprep.subr.mxu0 0.0
    %1343 = vmatpush1.msra.mxu0 %v211
    %1344 = vmatprep.subr.mxu0 0.0
    %1345 = vmatpush1.msra.mxu0 %v212
    %1346 = vmatprep.subr.mxu0 0.0
    %1347 = vmatpush1.msra.mxu0 %v213
    %1348 = vmatprep.subr.mxu0 0.0
    %1349 = vmatpush1.msra.mxu0 0.0
    %1350 = vmatprep.subr.mxu0 0.0
    %1351 = vmatpush1.msra.mxu0 0.0
    %1352 = vmatprep.subr.mxu0 0.0
    %1353 = vmatpush1.msra.mxu0 0.0
    %1354 = vmatprep.subr.mxu0 0.0
    %1355 = vmatpush1.msra.mxu0 0.0
    %1356 = vmatprep.subr.mxu0 0.0
    %1357 = vmatpush1.msra.mxu0 0.0
    %1358 = vmatprep.subr.mxu0 0.0
    %1359 = vmatpush1.msra.mxu0 0.0
    %1360 = vmatprep.subr.mxu0 0.0
    %1361 = vmatpush1.msra.mxu0 0.0
    %1362 = vmatprep.subr.mxu0 0.0
    %1363 = vmatpush1.msra.mxu0 0.0
    %1364 = vmatprep.subr.mxu0 0.0
    %1365 = vmatpush1.msra.mxu0 0.0
    %1366 = vmatprep.subr.mxu0 0.0
    %1367 = vmatpush1.msra.mxu0 0.0
    %1368 = vmatprep.subr.mxu0 0.0
    %1369 = vmatpush1.msra.mxu0 0.0
    %1370 = vmatprep.subr.mxu0 0.0
    %1371 = vmatpush1.msra.mxu0 0.0
    %1372 = vmatprep.subr.mxu0 0.0
    %1373 = vmatpush1.msra.mxu0 0.0
    %1374 = vmatprep.subr.mxu0 0.0
    %1375 = vmatpush1.msra.mxu0 0.0
    %1376 = vmatprep.subr.mxu0 0.0
    %1377 = vmatpush1.msra.mxu0 0.0
    %1378 = vmatprep.subr.mxu0 0.0
    %1379 = vmatpush1.msra.mxu0 0.0
    %1380 = vmatprep.mubr.f32.mxu0 0.0
    %1381 = vmatmul.mubr.f32.gmra.mrb[0].mxu0 %v82
    %v1382 = vpop.f32.mrb[0].mxu0
    %v1383 = vadd.f32 %v911, %v1382
    %v1384 = vpop.f32.mrb[0].mxu0
    %1385 = vmatprep.mubr.f32.mxu0 0.0
    %1386 = vmatmul.mubr.f32.gmra.mrb[0].mxu0 %v83
    %v1387 = vpop.f32.mrb[0].mxu0
    %v1388 = vadd.f32 %v916, %v1387
    %v1389 = vpop.f32.mrb[0].mxu0
    %1390 = vmatprep.mubr.f32.mxu0 0.0
    %1391 = vmatmul.mubr.f32.gmra.mrb[0].mxu0 %v84
    %v1392 = vpop.f32.mrb[0].mxu0
    %v1393 = vadd.f32 %v921, %v1392
    %v1394 = vpop.f32.mrb[0].mxu0
    %1395 = vmatprep.mubr.f32.mxu0 0.0
    %1396 = vmatmul.mubr.f32.gmra.mrb[0].mxu0 %v85
    %v1397 = vpop.f32.mrb[0].mxu0
    %v1398 = vadd.f32 %v926, %v1397
    %v1399 = vpop.f32.mrb[0].mxu0
    %1400 = vmatprep.mubr.f32.mxu0 0.0
    %1401 = vmatmul.mubr.f32.gmra.mrb[0].mxu0 %v86
    %v1402 = vpop.f32.mrb[0].mxu0
    %v1403 = vadd.f32 %v931, %v1402
    %v1404 = vpop.f32.mrb[0].mxu0
    %1405 = vmatprep.mubr.f32.mxu0 0.0
    %1406 = vmatmul.mubr.f32.gmra.mrb[0].mxu0 %v87
    %v1407 = vpop.f32.mrb[0].mxu0
    %v1408 = vadd.f32 %v936, %v1407
    %v1409 = vpop.f32.mrb[0].mxu0
    %1410 = vmatprep.mubr.f32.mxu0 0.0
    %1411 = vmatmul.mubr.f32.gmra.mrb[0].mxu0 %v88
    %v1412 = vpop.f32.mrb[0].mxu0
    %v1413 = vadd.f32 %v941, %v1412
    %v1414 = vpop.f32.mrb[0].mxu0
    %1415 = vmatprep.mubr.f32.mxu0 0.0
    %1416 = vmatmul.mubr.f32.gmra.mrb[0].mxu0 %v89
    %v1417 = vpop.f32.mrb[0].mxu0
    %v1418 = vadd.f32 %v946, %v1417
    %v1419 = vpop.f32.mrb[0].mxu0
    %1420 = vmatprep.mubr.f32.mxu0 0.0
    %1421 = vmatmul.mubr.f32.gmra.mrb[0].mxu0 %v90
    %v1422 = vpop.f32.mrb[0].mxu0
    %v1423 = vadd.f32 %v951, %v1422
    %v1424 = vpop.f32.mrb[0].mxu0
    %1425 = vmatprep.mubr.f32.mxu0 0.0
    %1426 = vmatmul.mubr.f32.gmra.mrb[0].mxu0 %v91
    %v1427 = vpop.f32.mrb[0].mxu0
    %v1428 = vadd.f32 %v956, %v1427
    %v1429 = vpop.f32.mrb[0].mxu0
    %1430 = vmatprep.mubr.f32.mxu0 0.0
    %1431 = vmatmul.mubr.f32.gmra.mrb[0].mxu0 %v92
    %v1432 = vpop.f32.mrb[0].mxu0
    %v1433 = vadd.f32 %v961, %v1432
    %v1434 = vpop.f32.mrb[0].mxu0
    %1435 = vmatprep.mubr.f32.mxu0 0.0
    %1436 = vmatmul.mubr.f32.gmra.mrb[0].mxu0 %v93
    %v1437 = vpop.f32.mrb[0].mxu0
    %v1438 = vadd.f32 %v966, %v1437
    %v1439 = vpop.f32.mrb[0].mxu0
    %1440 = vmatprep.mubr.f32.mxu0 0.0
    %1441 = vmatmul.mubr.f32.gmra.mrb[0].mxu0 %v94
    %v1442 = vpop.f32.mrb[0].mxu0
    %v1443 = vadd.f32 %v971, %v1442
    %v1444 = vpop.f32.mrb[0].mxu0
    %1445 = vmatprep.mubr.f32.mxu0 0.0
    %1446 = vmatmul.mubr.f32.gmra.mrb[0].mxu0 %v95
    %v1447 = vpop.f32.mrb[0].mxu0
    %v1448 = vadd.f32 %v976, %v1447
    %v1449 = vpop.f32.mrb[0].mxu0
    %1450 = vmatprep.mubr.f32.mxu0 0.0
    %1451 = vmatmul.mubr.f32.gmra.mrb[0].mxu0 %v96
    %v1452 = vpop.f32.mrb[0].mxu0
    %v1453 = vadd.f32 %v981, %v1452
    %v1454 = vpop.f32.mrb[0].mxu0
    %1455 = vmatprep.mubr.f32.mxu0 0.0
    %1456 = vmatmul.mubr.f32.gmra.mrb[0].mxu0 %v97
    %v1457 = vpop.f32.mrb[0].mxu0
    %v1458 = vadd.f32 %v986, %v1457
    %v1459 = vpop.f32.mrb[0].mxu0
    %1460 = vmatprep.mubr.f32.mxu0 0.0
    %1461 = vmatmul.mubr.f32.gmra.mrb[0].mxu0 %v98
    %v1462 = vpop.f32.mrb[0].mxu0
    %v1463 = vadd.f32 %v991, %v1462
    %v1464 = vpop.f32.mrb[0].mxu0
    %1465 = vmatprep.mubr.f32.mxu0 0.0
    %1466 = vmatmul.mubr.f32.gmra.mrb[0].mxu0 %v99
    %v1467 = vpop.f32.mrb[0].mxu0
    %v1468 = vadd.f32 %v996, %v1467
    %v1469 = vpop.f32.mrb[0].mxu0
    %1470 = vmatprep.mubr.f32.mxu0 0.0
    %1471 = vmatmul.mubr.f32.gmra.mrb[0].mxu0 %v100
    %v1472 = vpop.f32.mrb[0].mxu0
    %v1473 = vadd.f32 %v1001, %v1472
    %v1474 = vpop.f32.mrb[0].mxu0
    %1475 = vmatprep.mubr.f32.mxu0 0.0
    %1476 = vmatmul.mubr.f32.gmra.mrb[0].mxu0 %v101
    %v1477 = vpop.f32.mrb[0].mxu0
    %v1478 = vadd.f32 %v1006, %v1477
    %v1479 = vpop.f32.mrb[0].mxu0
    %1480 = vmatprep.mubr.f32.mxu0 0.0
    %1481 = vmatmul.mubr.f32.gmra.mrb[0].mxu0 %v102
    %v1482 = vpop.f32.mrb[0].mxu0
    %v1483 = vadd.f32 %v1011, %v1482
    %v1484 = vpop.f32.mrb[0].mxu0
    %1485 = vmatprep.mubr.f32.mxu0 0.0
    %1486 = vmatmul.mubr.f32.gmra.mrb[0].mxu0 %v103
    %v1487 = vpop.f32.mrb[0].mxu0
    %v1488 = vadd.f32 %v1016, %v1487
    %v1489 = vpop.f32.mrb[0].mxu0
    %1490 = vmatprep.mubr.f32.mxu0 0.0
    %1491 = vmatmul.mubr.f32.gmra.mrb[0].mxu0 %v104
    %v1492 = vpop.f32.mrb[0].mxu0
    %v1493 = vadd.f32 %v1021, %v1492
    %v1494 = vpop.f32.mrb[0].mxu0
    %1495 = vmatprep.mubr.f32.mxu0 0.0
    %1496 = vmatmul.mubr.f32.gmra.mrb[0].mxu0 %v105
    %v1497 = vpop.f32.mrb[0].mxu0
    %v1498 = vadd.f32 %v1026, %v1497
    %v1499 = vpop.f32.mrb[0].mxu0
    %1500 = vmatprep.mubr.f32.mxu0 0.0
    %1501 = vmatmul.mubr.f32.gmra.mrb[0].mxu0 %v106
    %v1502 = vpop.f32.mrb[0].mxu0
    %v1503 = vadd.f32 %v1031, %v1502
    %v1504 = vpop.f32.mrb[0].mxu0
    %1505 = vmatprep.mubr.f32.mxu0 0.0
    %1506 = vmatmul.mubr.f32.gmra.mrb[0].mxu0 %v107
    %v1507 = vpop.f32.mrb[0].mxu0
    %v1508 = vadd.f32 %v1036, %v1507
    %v1509 = vpop.f32.mrb[0].mxu0
    %1510 = vmatprep.mubr.f32.mxu0 0.0
    %1511 = vmatmul.mubr.f32.gmra.mrb[0].mxu0 %v108
    %v1512 = vpop.f32.mrb[0].mxu0
    %v1513 = vadd.f32 %v1041, %v1512
    %v1514 = vpop.f32.mrb[0].mxu0
    %1515 = vmatprep.mubr.f32.mxu0 0.0
    %1516 = vmatmul.mubr.f32.gmra.mrb[0].mxu0 %v109
    %v1517 = vpop.f32.mrb[0].mxu0
    %v1518 = vadd.f32 %v1046, %v1517
    %v1519 = vpop.f32.mrb[0].mxu0
    %1520 = vmatprep.mubr.f32.mxu0 0.0
    %1521 = vmatmul.mubr.f32.gmra.mrb[0].mxu0 %v110
    %v1522 = vpop.f32.mrb[0].mxu0
    %v1523 = vadd.f32 %v1051, %v1522
    %v1524 = vpop.f32.mrb[0].mxu0
    %1525 = vmatprep.mubr.f32.mxu0 0.0
    %1526 = vmatmul.mubr.f32.gmra.mrb[0].mxu0 %v111
    %v1527 = vpop.f32.mrb[0].mxu0
    %v1528 = vadd.f32 %v1056, %v1527
    %v1529 = vpop.f32.mrb[0].mxu0
    %1530 = vmatprep.mubr.f32.mxu0 0.0
    %1531 = vmatmul.mubr.f32.gmra.mrb[0].mxu0 %v112
    %v1532 = vpop.f32.mrb[0].mxu0
    %v1533 = vadd.f32 %v1061, %v1532
    %v1534 = vpop.f32.mrb[0].mxu0
    %1535 = vmatprep.mubr.f32.mxu0 0.0
    %1536 = vmatmul.mubr.f32.gmra.mrb[0].mxu0 %v113
    %v1537 = vpop.f32.mrb[0].mxu0
    %v1538 = vadd.f32 %v1066, %v1537
    %v1539 = vpop.f32.mrb[0].mxu0
    %1540 = vmatprep.mubr.f32.mxu0 0.0
    %1541 = vmatmul.mubr.f32.gmra.mrb[0].mxu0 %v114
    %v1542 = vpop.f32.mrb[0].mxu0
    %v1543 = vadd.f32 %v1071, %v1542
    %v1544 = vpop.f32.mrb[0].mxu0
    %1545 = vmatprep.mubr.f32.mxu0 0.0
    %1546 = vmatmul.mubr.f32.gmra.mrb[0].mxu0 %v115
    %v1547 = vpop.f32.mrb[0].mxu0
    %v1548 = vadd.f32 %v1076, %v1547
    %v1549 = vpop.f32.mrb[0].mxu0
    %1550 = vmatprep.mubr.f32.mxu0 0.0
    %1551 = vmatmul.mubr.f32.gmra.mrb[0].mxu0 %v116
    %v1552 = vpop.f32.mrb[0].mxu0
    %v1553 = vadd.f32 %v1081, %v1552
    %v1554 = vpop.f32.mrb[0].mxu0
    %1555 = vmatprep.mubr.f32.mxu0 0.0
    %1556 = vmatmul.mubr.f32.gmra.mrb[0].mxu0 %v117
    %v1557 = vpop.f32.mrb[0].mxu0
    %v1558 = vadd.f32 %v1086, %v1557
    %v1559 = vpop.f32.mrb[0].mxu0
    %1560 = vmatprep.mubr.f32.mxu0 0.0
    %1561 = vmatmul.mubr.f32.gmra.mrb[0].mxu0 %v118
    %v1562 = vpop.f32.mrb[0].mxu0
    %v1563 = vadd.f32 %v1091, %v1562
    %v1564 = vpop.f32.mrb[0].mxu0
    %1565 = vmatprep.mubr.f32.mxu0 0.0
    %1566 = vmatmul.mubr.f32.gmra.mrb[0].mxu0 %v119
    %v1567 = vpop.f32.mrb[0].mxu0
    %v1568 = vadd.f32 %v1096, %v1567
    %v1569 = vpop.f32.mrb[0].mxu0
    %1570 = vmatprep.mubr.f32.mxu0 0.0
    %1571 = vmatmul.mubr.f32.gmra.mrb[0].mxu0 %v120
    %v1572 = vpop.f32.mrb[0].mxu0
    %v1573 = vadd.f32 %v1101, %v1572
    %v1574 = vpop.f32.mrb[0].mxu0
    %1575 = vmatprep.mubr.f32.mxu0 0.0
    %1576 = vmatmul.mubr.f32.gmra.mrb[0].mxu0 %v121
    %v1577 = vpop.f32.mrb[0].mxu0
    %v1578 = vadd.f32 %v1106, %v1577
    %v1579 = vpop.f32.mrb[0].mxu0
    %1580 = vmatprep.mubr.f32.mxu0 0.0
    %1581 = vmatmul.mubr.f32.gmra.mrb[0].mxu0 %v122
    %v1582 = vpop.f32.mrb[0].mxu0
    %v1583 = vadd.f32 %v1111, %v1582
    %v1584 = vpop.f32.mrb[0].mxu0
    %1585 = vmatprep.mubr.f32.mxu0 0.0
    %1586 = vmatmul.mubr.f32.gmra.mrb[0].mxu0 %v123
    %v1587 = vpop.f32.mrb[0].mxu0
    %v1588 = vadd.f32 %v1116, %v1587
    %v1589 = vpop.f32.mrb[0].mxu0
    %1590 = vmatprep.mubr.f32.mxu0 0.0
    %1591 = vmatmul.mubr.f32.gmra.mrb[0].mxu0 %v124
    %v1592 = vpop.f32.mrb[0].mxu0
    %v1593 = vadd.f32 %v1121, %v1592
    %v1594 = vpop.f32.mrb[0].mxu0
    %1595 = vmatprep.mubr.f32.mxu0 0.0
    %1596 = vmatmul.mubr.f32.gmra.mrb[0].mxu0 %v125
    %v1597 = vpop.f32.mrb[0].mxu0
    %v1598 = vadd.f32 %v1126, %v1597
    %v1599 = vpop.f32.mrb[0].mxu0
    %1600 = vmatprep.mubr.f32.mxu0 0.0
    %1601 = vmatmul.mubr.f32.gmra.mrb[0].mxu0 %v126
    %v1602 = vpop.f32.mrb[0].mxu0
    %v1603 = vadd.f32 %v1131, %v1602
    %v1604 = vpop.f32.mrb[0].mxu0
    %1605 = vmatprep.mubr.f32.mxu0 0.0
    %1606 = vmatmul.mubr.f32.gmra.mrb[0].mxu0 %v127
    %v1607 = vpop.f32.mrb[0].mxu0
    %v1608 = vadd.f32 %v1136, %v1607
    %v1609 = vpop.f32.mrb[0].mxu0
    %1610 = vmatprep.mubr.f32.mxu0 0.0
    %1611 = vmatmul.mubr.f32.gmra.mrb[0].mxu0 %v128
    %v1612 = vpop.f32.mrb[0].mxu0
    %v1613 = vadd.f32 %v1141, %v1612
    %v1614 = vpop.f32.mrb[0].mxu0
    %1615 = vmatprep.mubr.f32.mxu0 0.0
    %1616 = vmatmul.mubr.f32.gmra.mrb[0].mxu0 %v129
    %v1617 = vpop.f32.mrb[0].mxu0
    %v1618 = vadd.f32 %v1146, %v1617
    %v1619 = vpop.f32.mrb[0].mxu0
    %1620 = vmatprep.mubr.f32.mxu0 0.0
    %1621 = vmatmul.mubr.f32.gmra.mrb[0].mxu0 %v130
    %v1622 = vpop.f32.mrb[0].mxu0
    %v1623 = vadd.f32 %v1151, %v1622
    %v1624 = vpop.f32.mrb[0].mxu0
    %1625 = vmatprep.mubr.f32.mxu0 0.0
    %1626 = vmatmul.mubr.f32.gmra.mrb[0].mxu0 %v131
    %v1627 = vpop.f32.mrb[0].mxu0
    %v1628 = vadd.f32 %v1156, %v1627
    %v1629 = vpop.f32.mrb[0].mxu0
    %1630 = vdwg.mxu0
    %v1631 = vld [vmem:[%s5] sm:$0x1]
    %v1633 = vlaneseq
    %v1634 = vshrl.u32 %v1633, 7
    %v1635 = vsub.s32 0, %v1634
    %v1636 = vrot.slane %v1631, %v1635
    %v1638 = vadd.f32 %v1383, %v1636
    %v1639 = vadd.f32 %v1388, %v1636
    %v1640 = vadd.f32 %v1393, %v1636
    %v1641 = vadd.f32 %v1398, %v1636
    %v1642 = vadd.f32 %v1403, %v1636
    %v1643 = vadd.f32 %v1408, %v1636
    %v1644 = vadd.f32 %v1413, %v1636
    %v1645 = vadd.f32 %v1418, %v1636
    %v1646 = vadd.f32 %v1423, %v1636
    %v1647 = vadd.f32 %v1428, %v1636
    %v1648 = vadd.f32 %v1433, %v1636
    %v1649 = vadd.f32 %v1438, %v1636
    %v1650 = vadd.f32 %v1443, %v1636
    %v1651 = vadd.f32 %v1448, %v1636
    %v1652 = vadd.f32 %v1453, %v1636
    %v1653 = vadd.f32 %v1458, %v1636
    %v1654 = vadd.f32 %v1463, %v1636
    %v1655 = vadd.f32 %v1468, %v1636
    %v1656 = vadd.f32 %v1473, %v1636
    %v1657 = vadd.f32 %v1478, %v1636
    %v1658 = vadd.f32 %v1483, %v1636
    %v1659 = vadd.f32 %v1488, %v1636
    %v1660 = vadd.f32 %v1493, %v1636
    %v1661 = vadd.f32 %v1498, %v1636
    %v1662 = vadd.f32 %v1503, %v1636
    %v1663 = vadd.f32 %v1508, %v1636
    %v1664 = vadd.f32 %v1513, %v1636
    %v1665 = vadd.f32 %v1518, %v1636
    %v1666 = vadd.f32 %v1523, %v1636
    %v1667 = vadd.f32 %v1528, %v1636
    %v1668 = vadd.f32 %v1533, %v1636
    %v1669 = vadd.f32 %v1538, %v1636
    %v1670 = vadd.f32 %v1543, %v1636
    %v1671 = vadd.f32 %v1548, %v1636
    %v1672 = vadd.f32 %v1553, %v1636
    %v1673 = vadd.f32 %v1558, %v1636
    %v1674 = vadd.f32 %v1563, %v1636
    %v1675 = vadd.f32 %v1568, %v1636
    %v1676 = vadd.f32 %v1573, %v1636
    %v1677 = vadd.f32 %v1578, %v1636
    %v1678 = vadd.f32 %v1583, %v1636
    %v1679 = vadd.f32 %v1588, %v1636
    %v1680 = vadd.f32 %v1593, %v1636
    %v1681 = vadd.f32 %v1598, %v1636
    %v1682 = vadd.f32 %v1603, %v1636
    %v1683 = vadd.f32 %v1608, %v1636
    %v1684 = vadd.f32 %v1613, %v1636
    %v1685 = vadd.f32 %v1618, %v1636
    %v1686 = vadd.f32 %v1623, %v1636
    %v1687 = vadd.f32 %v1628, %v1636
    %1688 = vst [vmem:[#allocation11] sm:$0xff] %v1638
    %1689 = vst [vmem:[#allocation11 + $0x8] sm:$0xff] %v1639
    %1690 = vst [vmem:[#allocation11 + $0x10] sm:$0xff] %v1640
    %1691 = vst [vmem:[#allocation11 + $0x18] sm:$0xff] %v1641
    %1692 = vst [vmem:[#allocation11 + $0x20] sm:$0xff] %v1642
    %1693 = vst [vmem:[#allocation11 + $0x28] sm:$0xff] %v1643
    %1694 = vst [vmem:[#allocation11 + $0x30] sm:$0xff] %v1644
    %1695 = vst [vmem:[#allocation11 + $0x38] sm:$0xff] %v1645
    %1696 = vst [vmem:[#allocation11 + $0x40] sm:$0xff] %v1646
    %1697 = vst [vmem:[#allocation11 + $0x48] sm:$0xff] %v1647
    %1698 = vst [vmem:[#allocation11 + $0x50] sm:$0xff] %v1648
    %1699 = vst [vmem:[#allocation11 + $0x58] sm:$0xff] %v1649
    %1700 = vst [vmem:[#allocation11 + $0x60] sm:$0xff] %v1650
    %1701 = vst [vmem:[#allocation11 + $0x68] sm:$0xff] %v1651
    %1702 = vst [vmem:[#allocation11 + $0x70] sm:$0xff] %v1652
    %1703 = vst [vmem:[#allocation11 + $0x78] sm:$0xff] %v1653
    %1704 = vst [vmem:[#allocation11 + $0x80] sm:$0xff] %v1654
    %1705 = vst [vmem:[#allocation11 + $0x88] sm:$0xff] %v1655
    %1706 = vst [vmem:[#allocation11 + $0x90] sm:$0xff] %v1656
    %1707 = vst [vmem:[#allocation11 + $0x98] sm:$0xff] %v1657
    %1708 = vst [vmem:[#allocation11 + $0xa0] sm:$0xff] %v1658
    %1709 = vst [vmem:[#allocation11 + $0xa8] sm:$0xff] %v1659
    %1710 = vst [vmem:[#allocation11 + $0xb0] sm:$0xff] %v1660
    %1711 = vst [vmem:[#allocation11 + $0xb8] sm:$0xff] %v1661
    %1712 = vst [vmem:[#allocation11 + $0xc0] sm:$0xff] %v1662
    %1713 = vst [vmem:[#allocation11 + $0xc8] sm:$0xff] %v1663
    %1714 = vst [vmem:[#allocation11 + $0xd0] sm:$0xff] %v1664
    %1715 = vst [vmem:[#allocation11 + $0xd8] sm:$0xff] %v1665
    %1716 = vst [vmem:[#allocation11 + $0xe0] sm:$0xff] %v1666
    %1717 = vst [vmem:[#allocation11 + $0xe8] sm:$0xff] %v1667
    %1718 = vst [vmem:[#allocation11 + $0xf0] sm:$0xff] %v1668
    %1719 = vst [vmem:[#allocation11 + $0xf8] sm:$0xff] %v1669
    %1720 = vst [vmem:[#allocation11 + $0x100] sm:$0xff] %v1670
    %1721 = vst [vmem:[#allocation11 + $0x108] sm:$0xff] %v1671
    %1722 = vst [vmem:[#allocation11 + $0x110] sm:$0xff] %v1672
    %1723 = vst [vmem:[#allocation11 + $0x118] sm:$0xff] %v1673
    %1724 = vst [vmem:[#allocation11 + $0x120] sm:$0xff] %v1674
    %1725 = vst [vmem:[#allocation11 + $0x128] sm:$0xff] %v1675
    %1726 = vst [vmem:[#allocation11 + $0x130] sm:$0xff] %v1676
    %1727 = vst [vmem:[#allocation11 + $0x138] sm:$0xff] %v1677
    %1728 = vst [vmem:[#allocation11 + $0x140] sm:$0xff] %v1678
    %1729 = vst [vmem:[#allocation11 + $0x148] sm:$0xff] %v1679
    %1730 = vst [vmem:[#allocation11 + $0x150] sm:$0xff] %v1680
    %1731 = vst [vmem:[#allocation11 + $0x158] sm:$0xff] %v1681
    %1732 = vst [vmem:[#allocation11 + $0x160] sm:$0xff] %v1682
    %1733 = vst [vmem:[#allocation11 + $0x168] sm:$0xff] %v1683
    %1734 = vst [vmem:[#allocation11 + $0x170] sm:$0xff] %v1684
    %1735 = vst [vmem:[#allocation11 + $0x178] sm:$0xff] %v1685
    %1736 = vst [vmem:[#allocation11 + $0x180] sm:$0xff] %v1686
    %1737 = vst [vmem:[#allocation11 + $0x188] sm:$0xff] %v1687
    // Predicated region
    $region42: #{tpu_custom_call.1} parent=1 // pred_check
      _
    $region43: #{tpu_custom_call.1} parent=1 // pred_check_branch
      %1739 = sbr.rel (0) target = $region45
    $region44: #{tpu_custom_call.1} parent=1 // pred_region
      %s1741 = ssub.s32 6400, 6400
      %1742 = vsyncadd [#allocation4], %s1741
      %s1743 = sshll.u32 [#allocation10], 4
      %s1744 = int_to_ptr.vmem [resolvable:$true] %s1743
      %1749 = dma.vmem_to_hbm [thread:$0]  %s1744, 6400, %s6, [#allocation4], 128, 128, 8
    $region45: #{tpu_custom_call.1} parent=1 // pred_fallthru
      _
    // Predicated region
    $region46: #{tpu_custom_call.1} parent=1 // pred_check
      _
    $region47: #{tpu_custom_call.1} parent=1 // pred_check_branch
      %1751 = sbr.rel (0) target = $region49
    $region48: #{tpu_custom_call.1} parent=1 // pred_region
      %s1753 = ssub.s32 6400, 6400
      %1754 = vsyncadd [#allocation12], %s1753
      %s1755 = sshll.u32 [#allocation11], 4
      %s1756 = int_to_ptr.vmem [resolvable:$true] %s1755
      %1761 = dma.vmem_to_hbm [thread:$0]  %s1756, 6400, %s7, [#allocation12], 128, 128, 8
    $region49: #{tpu_custom_call.1} parent=1 // pred_fallthru
      _
    // Predicated region
    $region50: #{tpu_custom_call.1} parent=1 // pred_check
      _
    $region51: #{tpu_custom_call.1} parent=1 // pred_check_branch
      %1763 = sbr.rel (0) target = $region53
    $region52: #{tpu_custom_call.1} parent=1 // pred_region
      %1764 = dma.done [#allocation4], 6400
    $region53: #{tpu_custom_call.1} parent=1 // pred_fallthru
      _
    // Predicated region
    $region54: #{tpu_custom_call.1} parent=1 // pred_check
      _
    $region55: #{tpu_custom_call.1} parent=1 // pred_check_branch
      %1766 = sbr.rel (0) target = $region57
    $region56: #{tpu_custom_call.1} parent=1 // pred_region
      %1767 = dma.done [#allocation12], 6400
    $region57: #{tpu_custom_call.1} parent=1 // pred_fallthru
      _
    %1768 = vsyncpa [#allocation3], 1
    %1769 = vsyncpa [#allocation6], 1
    %1770 = vsyncpa [#allocation9], 1
    %1771 = vsyncpa [#allocation4], 1
    %1772 = vsyncpa [#allocation12], 1

</llo_original>
